<compile_context>
chip_gen: v7x
topology: tpu7x:2x2x1
jax: 0.10.0
libtpu: 0.0.40
codegen_flags: <defaults>
</compile_context>

<pallas_src>
import jax
import jax.numpy as jnp
from jax.experimental import pallas as pl
from jax.experimental.pallas import tpu as pltpu


def _round_up(x, m):
    return (x + m - 1) // m * m


# --------------------------------------------------------------------------
# Fused GRU kernel: per (batch-tile, time-block) grid step
#   - one block-wide input projection (off the serial chain) into VMEM scratch
#   - tc guarded, statically unrolled serial timesteps (one hidden matmul each)
# --------------------------------------------------------------------------
def _make_gru_kernel(hp, tc, bt, d, seq_len):
    g = 3 * hp

    def gru_kernel(x_ref, h0_ref, w_i_ref, b_i_ref, w_h_ref, b_hn_ref,
                   out_ref, hn_ref, h_scratch, gi_scratch):
        t = pl.program_id(1)

        # Reset carried hidden state at the start of each batch tile's time sweep.
        @pl.when(t == 0)
        def _():
            h_scratch[...] = h0_ref[0].astype(jnp.float32)

        # ---- fused input projection for the whole time block ----------------
        # One (tc*bt, D) @ (D, 3*Hp) MXU matmul with (b_ir+b_hr | b_iz+b_hz | b_in)
        # folded in.  Result stays in VMEM scratch: no HBM round-trip.
        x2 = x_ref[...].astype(jnp.float32).reshape(tc * bt, d)
        gi_scratch[...] = (
            jnp.dot(x2, w_i_ref[...].astype(jnp.float32),
                    preferred_element_type=jnp.float32)
            + b_i_ref[...].astype(jnp.float32))

        # ---- serial recurrence ----------------------------------------------
        w_h = w_h_ref[...].astype(jnp.float32)          # (Hp, 3*Hp), resident
        w_h_rz = w_h[:, :2 * hp]                        # lane-aligned slabs
        w_h_n = w_h[:, 2 * hp:]
        # Only b_hn cannot be folded into the input projection (it is gated by r);
        # pre-broadcast it once per grid step.
        b_hn = jnp.broadcast_to(b_hn_ref[...].astype(jnp.float32), (bt, hp))

        base = t * tc
        # Static unroll of the tc inner timesteps; each real step does the r|z
        # matmul, starts the sigmoids, then the n matmul (EUP/MXU overlap).
        for s in range(tc):
            @pl.when(base + s < seq_len)        # skip padded timesteps entirely
            def _(s=s):
                h = h_scratch[...]
                gi = gi_scratch[pl.ds(s * bt, bt), :]          # (bt, 3*Hp)
                gh_rz = jnp.dot(h, w_h_rz, preferred_element_type=jnp.float32)
                r = jax.nn.sigmoid(gi[:, 0:hp] + gh_rz[:, 0:hp])
                z = jax.nn.sigmoid(gi[:, hp:2 * hp] + gh_rz[:, hp:2 * hp])
                gh_n = jnp.dot(h, w_h_n, preferred_element_type=jnp.float32)
                n = jnp.tanh(gi[:, 2 * hp:] + r * (gh_n + b_hn))
                h_new = n + z * (h - n)                        # == (1-z)*n + z*h
                h_scratch[...] = h_new
                out_ref[s] = h_new.astype(out_ref.dtype)

        # Final hidden state as its own (1, bt, Hp) output — no wrapper re-read
        # of the big padded output to extract it.
        @pl.when(t == pl.num_programs(1) - 1)
        def _():
            hn_ref[0] = h_scratch[...].astype(hn_ref.dtype)

    return gru_kernel


# --------------------------------------------------------------------------
# Parameter packing: PyTorch (w_ih, w_hh, b_ih, b_hh) -> fused, lane-padded mats
# --------------------------------------------------------------------------
def pack_gru_params(w_ih, w_hh, b_ih, b_hh, hp):
    H = w_hh.shape[1]
    pad_c = lambda m: jnp.pad(m, ((0, 0), (0, hp - m.shape[1])))
    pad_v = lambda v: jnp.pad(v, (0, hp - v.shape[0]))

    # PyTorch gate order: r, z, n.  Transpose so we compute x @ W / h @ W.
    wi = [w_ih[i * H:(i + 1) * H].T for i in range(3)]        # each (D, H)
    wh = [w_hh[i * H:(i + 1) * H].T for i in range(3)]        # each (H, H)
    bi = [b_ih[i * H:(i + 1) * H] for i in range(3)]
    bh = [b_hh[i * H:(i + 1) * H] for i in range(3)]

    w_i_cat = jnp.concatenate([pad_c(w) for w in wi], axis=1)                    # (D, 3*Hp)
    w_h_cat = jnp.concatenate(
        [jnp.pad(w, ((0, hp - H), (0, hp - H))) for w in wh], axis=1)            # (Hp, 3*Hp)
    # Fold b_ir+b_hr, b_iz+b_hz and b_in into the hoisted input projection; only
    # b_hn must stay inside the recurrence (it is multiplied by the reset gate).
    b_i_cat = jnp.concatenate(
        [pad_v(bi[0] + bh[0]), pad_v(bi[1] + bh[1]), pad_v(bi[2])])[None, :]     # (1, 3*Hp)
    b_hn = pad_v(bh[2])[None, :]                                                  # (1, Hp)
    return w_i_cat, w_h_cat, b_i_cat, b_hn


# --------------------------------------------------------------------------
# Wrapper: EncoderRNN.forward
# --------------------------------------------------------------------------
def encoder_rnn_forward(x, h0, params, *, tc=32, batch_tile=None,
                        weight_dtype=None,
                        vmem_limit_bytes=48 * 1024 * 1024):
    """GRU forward. x: (T, B, D), h0: (1, B, H). Returns (output (T,B,H), hidden (1,B,H))."""
    T, B, D = x.shape
    H = h0.shape[-1]
    dtype = x.dtype
    w_ih, w_hh, b_ih, b_hh = params

    hp = _round_up(H, 128)          # lane-dense hidden width
    g = 3 * hp                      # fused gate width (each gate slice lane-aligned)
    bp = _round_up(B, 8)            # sublane-aligned batch
    tc = max(1, min(tc, _round_up(T, 8)))   # keep time padding small; padded
    t_pad = _round_up(T, tc)                # steps are pl.when-guarded anyway
    # On v7x set batch_tile = bp // 2 only when bp % 16 == 0 (keeps bt % 8 == 0)
    # to use both TensorCores; single tile is right for v5e / v6e (1 TC/chip).
    bt = bp if batch_tile is None else batch_tile
    assert bp % bt == 0 and bt % 8 == 0, "batch_tile must divide padded batch and be a multiple of 8"
    nb, nt = bp // bt, t_pad // tc

    w_i_cat, w_h_cat, b_i_cat, b_hn = pack_gru_params(w_ih, w_hh, b_ih, b_hh, hp)
    if weight_dtype is not None:
        # bf16 resident weights (halved VMEM/HBM); kernel upcasts to f32 before
        # any accumulation / transcendental math.
        w_i_cat = w_i_cat.astype(weight_dtype)
        w_h_cat = w_h_cat.astype(weight_dtype)

    x_p = jnp.pad(x, ((0, t_pad - T), (0, bp - B), (0, 0)))
    h0_p = jnp.pad(h0, ((0, 0), (0, bp - B), (0, hp - H))).astype(jnp.float32)

    # ---- explicit VMEM budget check (double-buffered blocks + scratch) ------
    x_isz = jnp.dtype(dtype).itemsize
    w_isz = jnp.dtype(w_h_cat.dtype).itemsize
    vmem_est = (
        2 * (tc * bt * D * x_isz          # x block
             + bt * hp * 4                # h0 block
             + D * g * w_isz + g * 4      # fused input weights + biases
             + hp * g * w_isz + hp * 4    # fused hidden weights + b_hn
             + tc * bt * hp * x_isz       # out block
             + bt * hp * x_isz)           # hn block
        + bt * hp * 4                     # h carry scratch
        + tc * bt * g * 4)                # gate scratch
    assert vmem_est <= vmem_limit_bytes, (
        f"VMEM budget exceeded ({vmem_est} > {vmem_limit_bytes}); lower tc/batch_tile "
        f"or use weight_dtype=jnp.bfloat16")

    out_p, hn_p = pl.pallas_call(
        _make_gru_kernel(hp, tc, bt, D, T),
        out_shape=(jax.ShapeDtypeStruct((t_pad, bp, hp), dtype),
                   jax.ShapeDtypeStruct((1, bp, hp), dtype)),
        grid=(nb, nt),
        in_specs=[
            pl.BlockSpec((tc, bt, D), lambda b, t: (t, b, 0)),   # x block
            pl.BlockSpec((1, bt, hp), lambda b, t: (0, b, 0)),   # h0 (per batch tile)
            pl.BlockSpec((D, g), lambda b, t: (0, 0)),           # fused input weights
            pl.BlockSpec((1, g), lambda b, t: (0, 0)),           # fused input biases
            pl.BlockSpec((hp, g), lambda b, t: (0, 0)),          # fused hidden weights
            pl.BlockSpec((1, hp), lambda b, t: (0, 0)),          # b_hn
        ],
        out_specs=[
            pl.BlockSpec((tc, bt, hp), lambda b, t: (t, b, 0)),  # all hidden states
            pl.BlockSpec((1, bt, hp), lambda b, t: (0, b, 0)),   # final hidden state
        ],
        scratch_shapes=[
            pltpu.VMEM((bt, hp), jnp.float32),                   # carried hidden state
            pltpu.VMEM((tc * bt, g), jnp.float32),               # per-block input gates
        ],
        compiler_params=pltpu.CompilerParams(
            dimension_semantics=("parallel", "arbitrary"),
            vmem_limit_bytes=vmem_limit_bytes),
        cost_estimate=pl.CostEstimate(
            flops=(2 * t_pad * bp * D * g          # input projection
                   + 2 * T * bp * hp * g           # recurrence matmuls
                   + 12 * T * bp * hp),            # gate elementwise
            transcendentals=3 * T * bp * hp,
            bytes_accessed=int(t_pad * bp * D * x_isz
                               + (D + hp) * g * w_isz
                               + (t_pad + 1) * bp * hp * x_isz)),
    )(x_p, h0_p, w_i_cat, b_i_cat, w_h_cat, b_hn)

    # De-pad.  These slices are identity ops (elided by XLA) when the caller
    # keeps H a multiple of 128, B a multiple of 8 and T a multiple of tc.
    out = out_p[:T, :B, :H]
    hn = hn_p[:, :B, :H]
    return out, hn


# --------------------------------------------------------------------------
# Init (mimics torch.nn.GRU: U(-1/sqrt(H), 1/sqrt(H))) and pure-JAX reference
# --------------------------------------------------------------------------
def init_gru_params(key, input_size, hidden_size, dtype=jnp.float32):
    k = hidden_size ** -0.5
    k1, k2, k3, k4 = jax.random.split(key, 4)
    w_ih = jax.random.uniform(k1, (3 * hidden_size, input_size), dtype, -k, k)
    w_hh = jax.random.uniform(k2, (3 * hidden_size, hidden_size), dtype, -k, k)
    b_ih = jax.random.uniform(k3, (3 * hidden_size,), dtype, -k, k)
    b_hh = jax.random.uniform(k4, (3 * hidden_size,), dtype, -k, k)
    return w_ih, w_hh, b_ih, b_hh


def gru_reference(x, h0, params):
    w_ih, w_hh, b_ih, b_hh = params
    H = w_hh.shape[1]
    w_ir, w_iz, w_in = w_ih[0:H].T, w_ih[H:2 * H].T, w_ih[2 * H:].T
    w_hr, w_hz, w_hn = w_hh[0:H].T, w_hh[H:2 * H].T, w_hh[2 * H:].T
    b_ir, b_iz, b_in = b_ih[0:H], b_ih[H:2 * H], b_ih[2 * H:]
    b_hr, b_hz, b_hn = b_hh[0:H], b_hh[H:2 * H], b_hh[2 * H:]

    def step(h, x_t):
        r = jax.nn.sigmoid(x_t @ w_ir + b_ir + h @ w_hr + b_hr)
        z = jax.nn.sigmoid(x_t @ w_iz + b_iz + h @ w_hz + b_hz)
        n = jnp.tanh(x_t @ w_in + b_in + r * (h @ w_hn + b_hn))
        h_new = (1.0 - z) * n + z * h
        return h_new, h_new

    h_final, outs = jax.lax.scan(step, h0[0], x)
    return outs, h_final[None]


if __name__ == "__main__":
    # Small shapes consistent with the module (seq-first GRU); exercises H->128
    # lane padding, batch 5->8 sublane padding, guarded time padding, the
    # hidden-state carry across time-block grid steps and the hn side output.
    seq_len, batch, input_size, hidden_size = 10, 5, 16, 32

    key = jax.random.PRNGKey(0)
    k_param, k_x, k_h = jax.random.split(key, 3)

    params = init_gru_params(k_param, input_size, hidden_size)
    x = jax.random.normal(k_x, (seq_len, batch, input_size), jnp.float32)
    # EncoderRNN.initHidden() passes zeros; a random h0 is a stricter test.
    h0 = 0.1 * jax.random.normal(k_h, (1, batch, hidden_size), jnp.float32)

    fwd = jax.jit(encoder_rnn_forward,
                  static_argnames=("tc", "batch_tile", "weight_dtype",
                                   "vmem_limit_bytes"))

    out_exp, hn_exp = gru_reference(x, h0, params)

    # Path 1: small tc -> two time blocks (tests the VMEM h carry + pl.when guard).
    out, hn = fwd(x, h0, params, tc=8)
    out = jax.block_until_ready(out)
    hn = jax.block_until_ready(hn)
    assert out.shape == (seq_len, batch, hidden_size)
    assert hn.shape == (1, batch, hidden_size)
    assert jnp.allclose(out, out_exp, atol=3e-5, rtol=3e-5)
    assert jnp.allclose(hn, hn_exp, atol=3e-5, rtol=3e-5)

    # Path 2: default tc (clamped) -> single time block with guarded padded steps.
    out2, hn2 = fwd(x, h0, params)
    out2 = jax.block_until_ready(out2)
    hn2 = jax.block_until_ready(hn2)
    assert jnp.allclose(out2, out_exp, atol=3e-5, rtol=3e-5)
    assert jnp.allclose(hn2, hn_exp, atol=3e-5, rtol=3e-5)

    print("KERNEL_OK")
</pallas_src>

<mosaic_0001>
module attributes {stable_mosaic.version = 11 : i64} {
  func.func @gru_kernel(%arg0: i32, %arg1: i32, %arg2: memref<8x8x16xf32, #tpu.memory_space<vmem>>, %arg3: memref<1x8x128xf32, #tpu.memory_space<vmem>>, %arg4: memref<16x384xf32, #tpu.memory_space<vmem>>, %arg5: memref<1x384xf32, #tpu.memory_space<vmem>>, %arg6: memref<128x384xf32, #tpu.memory_space<vmem>>, %arg7: memref<1x128xf32, #tpu.memory_space<vmem>>, %arg8: memref<8x8x128xf32, #tpu.memory_space<vmem>>, %arg9: memref<1x8x128xf32, #tpu.memory_space<vmem>>, %arg10: memref<8x128xf32, #tpu.memory_space<vmem>>, %arg11: memref<64x384xf32, #tpu.memory_space<vmem>>) attributes {dimension_semantics = [#tpu.dimension_semantics<parallel>, #tpu.dimension_semantics<arbitrary>], iteration_bounds = array<i64: 1, 2>, scalar_prefetch = 0 : i64, scratch_operands = 2 : i64, tpu.core_type = #tpu.core_type<tc>, window_params = [{transform_indices = @transform_0, window_bounds = array<i64: 8, 8, 16>}, {transform_indices = @transform_1, window_bounds = array<i64: 1, 8, 128>}, {pipeline_mode = #tpu.pipeline_mode<synchronous>, transform_indices = @transform_2, window_bounds = array<i64: 16, 384>}, {pipeline_mode = #tpu.pipeline_mode<synchronous>, transform_indices = @transform_3, window_bounds = array<i64: 1, 384>}, {pipeline_mode = #tpu.pipeline_mode<synchronous>, transform_indices = @transform_4, window_bounds = array<i64: 128, 384>}, {pipeline_mode = #tpu.pipeline_mode<synchronous>, transform_indices = @transform_5, window_bounds = array<i64: 1, 128>}, {transform_indices = @transform_6, window_bounds = array<i64: 8, 8, 128>}, {transform_indices = @transform_7, window_bounds = array<i64: 1, 8, 128>}]} {
    %c0_i32 = arith.constant 0 : i32
    %0 = arith.cmpi eq, %arg1, %c0_i32 : i32
    %1 = arith.extui %0 : i1 to i32
    %c0_i32_0 = arith.constant 0 : i32
    %2 = arith.cmpi ne, %1, %c0_i32_0 : i32
    scf.if %2 {
      %c0_31 = arith.constant 0 : index
      %c0_32 = arith.constant 0 : index
      %c0_33 = arith.constant 0 : index
      %53 = vector.load %arg3[%c0_31, %c0_32, %c0_33] : memref<1x8x128xf32, #tpu.memory_space<vmem>>, vector<1x8x128xf32>
      %54 = vector.shape_cast %53 : vector<1x8x128xf32> to vector<8x128xf32>
      %c0_34 = arith.constant 0 : index
      %c0_35 = arith.constant 0 : index
      %55 = vector.load %arg10[%c0_34, %c0_35] : memref<8x128xf32, #tpu.memory_space<vmem>>, vector<8x128xf32>
      tpu.vector_store %arg10[%c0_34, %c0_35], %54 {strides = array<i32>} : memref<8x128xf32, #tpu.memory_space<vmem>>, vector<8x128xf32>,
    } else {
    }
    %c0 = arith.constant 0 : index
    %c0_1 = arith.constant 0 : index
    %c0_2 = arith.constant 0 : index
    %3 = vector.load %arg2[%c0, %c0_1, %c0_2] : memref<8x8x16xf32, #tpu.memory_space<vmem>>, vector<8x8x16xf32>
    %4 = vector.shape_cast %3 : vector<8x8x16xf32> to vector<64x16xf32>
    %c0_3 = arith.constant 0 : index
    %c0_4 = arith.constant 0 : index
    %5 = vector.load %arg4[%c0_3, %c0_4] : memref<16x384xf32, #tpu.memory_space<vmem>>, vector<16x384xf32>
    %cst = arith.constant dense<0.000000e+00> : vector<64x384xf32>
    %6 = tpu.matmul %4, %5, %cst {dimension_numbers = #tpu.dot_dimension_numbers<[1], [0], [0], [1], [0, 0, 1, 1], [], []>} : vector<64x16xf32>, vector<16x384xf32>, vector<64x384xf32> -> vector<64x384xf32>
    %c0_5 = arith.constant 0 : index
    %c0_6 = arith.constant 0 : index
    %7 = vector.load %arg5[%c0_5, %c0_6] : memref<1x384xf32, #tpu.memory_space<vmem>>, vector<1x384xf32>
    %8 = vector.broadcast %7 : vector<1x384xf32> to vector<64x384xf32>
    %9 = arith.addf %6, %8 : vector<64x384xf32>
    %c0_7 = arith.constant 0 : index
    %c0_8 = arith.constant 0 : index
    %10 = vector.load %arg11[%c0_7, %c0_8] : memref<64x384xf32, #tpu.memory_space<vmem>>, vector<64x384xf32>
    tpu.vector_store %arg11[%c0_7, %c0_8], %9 {strides = array<i32>} : memref<64x384xf32, #tpu.memory_space<vmem>>, vector<64x384xf32>,
    %c0_9 = arith.constant 0 : index
    %c0_10 = arith.constant 0 : index
    %11 = vector.load %arg6[%c0_9, %c0_10] : memref<128x384xf32, #tpu.memory_space<vmem>>, vector<128x384xf32>
    %12 = vector.extract_strided_slice %11 {offsets = [0, 0], sizes = [128, 256], strides = [1, 1]} : vector<128x384xf32> to vector<128x256xf32>
    %13 = vector.extract_strided_slice %11 {offsets = [0, 256], sizes = [128, 128], strides = [1, 1]} : vector<128x384xf32> to vector<128x128xf32>
    %c0_11 = arith.constant 0 : index
    %c0_12 = arith.constant 0 : index
    %14 = vector.load %arg7[%c0_11, %c0_12] : memref<1x128xf32, #tpu.memory_space<vmem>>, vector<1x128xf32>
    %15 = vector.shape_cast %14 : vector<1x128xf32> to vector<1x128xf32>
    %16 = vector.broadcast %15 : vector<1x128xf32> to vector<8x128xf32>
    %c8_i32 = arith.constant 8 : i32
    %17 = arith.muli %arg1, %c8_i32 : i32
    %c0_i32_13 = arith.constant 0 : i32
    %18 = arith.addi %17, %c0_i32_13 : i32
    %c10_i32 = arith.constant 10 : i32
    %19 = arith.cmpi slt, %18, %c10_i32 : i32
    %20 = arith.extui %19 : i1 to i32
    %c0_i32_14 = arith.constant 0 : i32
    %21 = arith.cmpi ne, %20, %c0_i32_14 : i32
    scf.if %21 {
      %c0_31 = arith.constant 0 : index
      %c0_32 = arith.constant 0 : index
      %53 = vector.load %arg10[%c0_31, %c0_32] : memref<8x128xf32, #tpu.memory_space<vmem>>, vector<8x128xf32>
      %c0_33 = arith.constant 0 : index
      %c0_34 = arith.constant 0 : index
      %54 = vector.load %arg11[%c0_33, %c0_34] : memref<64x384xf32, #tpu.memory_space<vmem>>, vector<8x384xf32>
      %cst_35 = arith.constant dense<0.000000e+00> : vector<8x256xf32>
      %55 = tpu.matmul %53, %12, %cst_35 {dimension_numbers = #tpu.dot_dimension_numbers<[1], [0], [0], [1], [0, 0, 1, 1], [], []>} : vector<8x128xf32>, vector<128x256xf32>, vector<8x256xf32> -> vector<8x256xf32>
      %56 = vector.extract_strided_slice %54 {offsets = [0, 0], sizes = [8, 128], strides = [1, 1]} : vector<8x384xf32> to vector<8x128xf32>
      %57 = vector.extract_strided_slice %55 {offsets = [0, 0], sizes = [8, 128], strides = [1, 1]} : vector<8x256xf32> to vector<8x128xf32>
      %58 = arith.addf %56, %57 : vector<8x128xf32>
      %59 = arith.negf %58 : vector<8x128xf32>
      %60 = math.exp %59 : vector<8x128xf32>
      %cst_36 = arith.constant 1.000000e+00 : f32
      %61 = vector.broadcast %cst_36 : f32 to vector<8x128xf32>
      %62 = arith.addf %61, %60 : vector<8x128xf32>
      %63 = arith.divf %61, %62 : vector<8x128xf32>
      %64 = vector.extract_strided_slice %54 {offsets = [0, 128], sizes = [8, 128], strides = [1, 1]} : vector<8x384xf32> to vector<8x128xf32>
      %65 = vector.extract_strided_slice %55 {offsets = [0, 128], sizes = [8, 128], strides = [1, 1]} : vector<8x256xf32> to vector<8x128xf32>
      %66 = arith.addf %64, %65 : vector<8x128xf32>
      %67 = arith.negf %66 : vector<8x128xf32>
      %68 = math.exp %67 : vector<8x128xf32>
      %cst_37 = arith.constant 1.000000e+00 : f32
      %69 = vector.broadcast %cst_37 : f32 to vector<8x128xf32>
      %70 = arith.addf %69, %68 : vector<8x128xf32>
      %71 = arith.divf %69, %70 : vector<8x128xf32>
      %cst_38 = arith.constant dense<0.000000e+00> : vector<8x128xf32>
      %72 = tpu.matmul %53, %13, %cst_38 {dimension_numbers = #tpu.dot_dimension_numbers<[1], [0], [0], [1], [0, 0, 1, 1], [], []>} : vector<8x128xf32>, vector<128x128xf32>, vector<8x128xf32> -> vector<8x128xf32>
      %73 = vector.extract_strided_slice %54 {offsets = [0, 256], sizes = [8, 128], strides = [1, 1]} : vector<8x384xf32> to vector<8x128xf32>
      %74 = arith.addf %72, %16 : vector<8x128xf32>
      %75 = arith.mulf %63, %74 : vector<8x128xf32>
      %76 = arith.addf %73, %75 : vector<8x128xf32>
      %77 = math.tanh %76 : vector<8x128xf32>
      %78 = arith.subf %53, %77 : vector<8x128xf32>
      %79 = arith.mulf %71, %78 : vector<8x128xf32>
      %80 = arith.addf %77, %79 : vector<8x128xf32>
      %c0_39 = arith.constant 0 : index
      %c0_40 = arith.constant 0 : index
      %81 = vector.load %arg10[%c0_39, %c0_40] : memref<8x128xf32, #tpu.memory_space<vmem>>, vector<8x128xf32>
      tpu.vector_store %arg10[%c0_39, %c0_40], %80 {strides = array<i32>} : memref<8x128xf32, #tpu.memory_space<vmem>>, vector<8x128xf32>,
      %c0_41 = arith.constant 0 : index
      %c0_42 = arith.constant 0 : index
      %c0_43 = arith.constant 0 : index
      %82 = vector.load %arg8[%c0_41, %c0_42, %c0_43] : memref<8x8x128xf32, #tpu.memory_space<vmem>>, vector<1x8x128xf32>
      %83 = vector.shape_cast %82 : vector<1x8x128xf32> to vector<8x128xf32>
      %84 = vector.shape_cast %80 : vector<8x128xf32> to vector<1x8x128xf32>
      tpu.vector_store %arg8[%c0_41, %c0_42, %c0_43], %84 {strides = array<i32>} : memref<8x8x128xf32, #tpu.memory_space<vmem>>, vector<1x8x128xf32>,
    } else {
    }
    %c1_i32 = arith.constant 1 : i32
    %22 = arith.addi %17, %c1_i32 : i32
    %c10_i32_15 = arith.constant 10 : i32
    %23 = arith.cmpi slt, %22, %c10_i32_15 : i32
    %24 = arith.extui %23 : i1 to i32
    %c0_i32_16 = arith.constant 0 : i32
    %25 = arith.cmpi ne, %24, %c0_i32_16 : i32
    scf.if %25 {
      %c0_31 = arith.constant 0 : index
      %c0_32 = arith.constant 0 : index
      %53 = vector.load %arg10[%c0_31, %c0_32] : memref<8x128xf32, #tpu.memory_space<vmem>>, vector<8x128xf32>
      %c8 = arith.constant 8 : index
      %c0_33 = arith.constant 0 : index
      %54 = vector.load %arg11[%c8, %c0_33] : memref<64x384xf32, #tpu.memory_space<vmem>>, vector<8x384xf32>
      %cst_34 = arith.constant dense<0.000000e+00> : vector<8x256xf32>
      %55 = tpu.matmul %53, %12, %cst_34 {dimension_numbers = #tpu.dot_dimension_numbers<[1], [0], [0], [1], [0, 0, 1, 1], [], []>} : vector<8x128xf32>, vector<128x256xf32>, vector<8x256xf32> -> vector<8x256xf32>
      %56 = vector.extract_strided_slice %54 {offsets = [0, 0], sizes = [8, 128], strides = [1, 1]} : vector<8x384xf32> to vector<8x128xf32>
      %57 = vector.extract_strided_slice %55 {offsets = [0, 0], sizes = [8, 128], strides = [1, 1]} : vector<8x256xf32> to vector<8x128xf32>
      %58 = arith.addf %56, %57 : vector<8x128xf32>
      %59 = arith.negf %58 : vector<8x128xf32>
      %60 = math.exp %59 : vector<8x128xf32>
      %cst_35 = arith.constant 1.000000e+00 : f32
      %61 = vector.broadcast %cst_35 : f32 to vector<8x128xf32>
      %62 = arith.addf %61, %60 : vector<8x128xf32>
      %63 = arith.divf %61, %62 : vector<8x128xf32>
      %64 = vector.extract_strided_slice %54 {offsets = [0, 128], sizes = [8, 128], strides = [1, 1]} : vector<8x384xf32> to vector<8x128xf32>
      %65 = vector.extract_strided_slice %55 {offsets = [0, 128], sizes = [8, 128], strides = [1, 1]} : vector<8x256xf32> to vector<8x128xf32>
      %66 = arith.addf %64, %65 : vector<8x128xf32>
      %67 = arith.negf %66 : vector<8x128xf32>
      %68 = math.exp %67 : vector<8x128xf32>
      %cst_36 = arith.constant 1.000000e+00 : f32
      %69 = vector.broadcast %cst_36 : f32 to vector<8x128xf32>
      %70 = arith.addf %69, %68 : vector<8x128xf32>
      %71 = arith.divf %69, %70 : vector<8x128xf32>
      %cst_37 = arith.constant dense<0.000000e+00> : vector<8x128xf32>
      %72 = tpu.matmul %53, %13, %cst_37 {dimension_numbers = #tpu.dot_dimension_numbers<[1], [0], [0], [1], [0, 0, 1, 1], [], []>} : vector<8x128xf32>, vector<128x128xf32>, vector<8x128xf32> -> vector<8x128xf32>
      %73 = vector.extract_strided_slice %54 {offsets = [0, 256], sizes = [8, 128], strides = [1, 1]} : vector<8x384xf32> to vector<8x128xf32>
      %74 = arith.addf %72, %16 : vector<8x128xf32>
      %75 = arith.mulf %63, %74 : vector<8x128xf32>
      %76 = arith.addf %73, %75 : vector<8x128xf32>
      %77 = math.tanh %76 : vector<8x128xf32>
      %78 = arith.subf %53, %77 : vector<8x128xf32>
      %79 = arith.mulf %71, %78 : vector<8x128xf32>
      %80 = arith.addf %77, %79 : vector<8x128xf32>
      %c0_38 = arith.constant 0 : index
      %c0_39 = arith.constant 0 : index
      %81 = vector.load %arg10[%c0_38, %c0_39] : memref<8x128xf32, #tpu.memory_space<vmem>>, vector<8x128xf32>
      tpu.vector_store %arg10[%c0_38, %c0_39], %80 {strides = array<i32>} : memref<8x128xf32, #tpu.memory_space<vmem>>, vector<8x128xf32>,
      %c1 = arith.constant 1 : index
      %c0_40 = arith.constant 0 : index
      %c0_41 = arith.constant 0 : index
      %82 = vector.load %arg8[%c1, %c0_40, %c0_41] : memref<8x8x128xf32, #tpu.memory_space<vmem>>, vector<1x8x128xf32>
      %83 = vector.shape_cast %82 : vector<1x8x128xf32> to vector<8x128xf32>
      %84 = vector.shape_cast %80 : vector<8x128xf32> to vector<1x8x128xf32>
      tpu.vector_store %arg8[%c1, %c0_40, %c0_41], %84 {strides = array<i32>} : memref<8x8x128xf32, #tpu.memory_space<vmem>>, vector<1x8x128xf32>,
    } else {
    }
    %c2_i32 = arith.constant 2 : i32
    %26 = arith.addi %17, %c2_i32 : i32
    %c10_i32_17 = arith.constant 10 : i32
    %27 = arith.cmpi slt, %26, %c10_i32_17 : i32
    %28 = arith.extui %27 : i1 to i32
    %c0_i32_18 = arith.constant 0 : i32
    %29 = arith.cmpi ne, %28, %c0_i32_18 : i32
    scf.if %29 {
      %c0_31 = arith.constant 0 : index
      %c0_32 = arith.constant 0 : index
      %53 = vector.load %arg10[%c0_31, %c0_32] : memref<8x128xf32, #tpu.memory_space<vmem>>, vector<8x128xf32>
      %c16 = arith.constant 16 : index
      %c0_33 = arith.constant 0 : index
      %54 = vector.load %arg11[%c16, %c0_33] : memref<64x384xf32, #tpu.memory_space<vmem>>, vector<8x384xf32>
      %cst_34 = arith.constant dense<0.000000e+00> : vector<8x256xf32>
      %55 = tpu.matmul %53, %12, %cst_34 {dimension_numbers = #tpu.dot_dimension_numbers<[1], [0], [0], [1], [0, 0, 1, 1], [], []>} : vector<8x128xf32>, vector<128x256xf32>, vector<8x256xf32> -> vector<8x256xf32>
      %56 = vector.extract_strided_slice %54 {offsets = [0, 0], sizes = [8, 128], strides = [1, 1]} : vector<8x384xf32> to vector<8x128xf32>
      %57 = vector.extract_strided_slice %55 {offsets = [0, 0], sizes = [8, 128], strides = [1, 1]} : vector<8x256xf32> to vector<8x128xf32>
      %58 = arith.addf %56, %57 : vector<8x128xf32>
      %59 = arith.negf %58 : vector<8x128xf32>
      %60 = math.exp %59 : vector<8x128xf32>
      %cst_35 = arith.constant 1.000000e+00 : f32
      %61 = vector.broadcast %cst_35 : f32 to vector<8x128xf32>
      %62 = arith.addf %61, %60 : vector<8x128xf32>
      %63 = arith.divf %61, %62 : vector<8x128xf32>
      %64 = vector.extract_strided_slice %54 {offsets = [0, 128], sizes = [8, 128], strides = [1, 1]} : vector<8x384xf32> to vector<8x128xf32>
      %65 = vector.extract_strided_slice %55 {offsets = [0, 128], sizes = [8, 128], strides = [1, 1]} : vector<8x256xf32> to vector<8x128xf32>
      %66 = arith.addf %64, %65 : vector<8x128xf32>
      %67 = arith.negf %66 : vector<8x128xf32>
      %68 = math.exp %67 : vector<8x128xf32>
      %cst_36 = arith.constant 1.000000e+00 : f32
      %69 = vector.broadcast %cst_36 : f32 to vector<8x128xf32>
      %70 = arith.addf %69, %68 : vector<8x128xf32>
      %71 = arith.divf %69, %70 : vector<8x128xf32>
      %cst_37 = arith.constant dense<0.000000e+00> : vector<8x128xf32>
      %72 = tpu.matmul %53, %13, %cst_37 {dimension_numbers = #tpu.dot_dimension_numbers<[1], [0], [0], [1], [0, 0, 1, 1], [], []>} : vector<8x128xf32>, vector<128x128xf32>, vector<8x128xf32> -> vector<8x128xf32>
      %73 = vector.extract_strided_slice %54 {offsets = [0, 256], sizes = [8, 128], strides = [1, 1]} : vector<8x384xf32> to vector<8x128xf32>
      %74 = arith.addf %72, %16 : vector<8x128xf32>
      %75 = arith.mulf %63, %74 : vector<8x128xf32>
      %76 = arith.addf %73, %75 : vector<8x128xf32>
      %77 = math.tanh %76 : vector<8x128xf32>
      %78 = arith.subf %53, %77 : vector<8x128xf32>
      %79 = arith.mulf %71, %78 : vector<8x128xf32>
      %80 = arith.addf %77, %79 : vector<8x128xf32>
      %c0_38 = arith.constant 0 : index
      %c0_39 = arith.constant 0 : index
      %81 = vector.load %arg10[%c0_38, %c0_39] : memref<8x128xf32, #tpu.memory_space<vmem>>, vector<8x128xf32>
      tpu.vector_store %arg10[%c0_38, %c0_39], %80 {strides = array<i32>} : memref<8x128xf32, #tpu.memory_space<vmem>>, vector<8x128xf32>,
      %c2 = arith.constant 2 : index
      %c0_40 = arith.constant 0 : index
      %c0_41 = arith.constant 0 : index
      %82 = vector.load %arg8[%c2, %c0_40, %c0_41] : memref<8x8x128xf32, #tpu.memory_space<vmem>>, vector<1x8x128xf32>
      %83 = vector.shape_cast %82 : vector<1x8x128xf32> to vector<8x128xf32>
      %84 = vector.shape_cast %80 : vector<8x128xf32> to vector<1x8x128xf32>
      tpu.vector_store %arg8[%c2, %c0_40, %c0_41], %84 {strides = array<i32>} : memref<8x8x128xf32, #tpu.memory_space<vmem>>, vector<1x8x128xf32>,
    } else {
    }
    %c3_i32 = arith.constant 3 : i32
    %30 = arith.addi %17, %c3_i32 : i32
    %c10_i32_19 = arith.constant 10 : i32
    %31 = arith.cmpi slt, %30, %c10_i32_19 : i32
    %32 = arith.extui %31 : i1 to i32
    %c0_i32_20 = arith.constant 0 : i32
    %33 = arith.cmpi ne, %32, %c0_i32_20 : i32
    scf.if %33 {
      %c0_31 = arith.constant 0 : index
      %c0_32 = arith.constant 0 : index
      %53 = vector.load %arg10[%c0_31, %c0_32] : memref<8x128xf32, #tpu.memory_space<vmem>>, vector<8x128xf32>
      %c24 = arith.constant 24 : index
      %c0_33 = arith.constant 0 : index
      %54 = vector.load %arg11[%c24, %c0_33] : memref<64x384xf32, #tpu.memory_space<vmem>>, vector<8x384xf32>
      %cst_34 = arith.constant dense<0.000000e+00> : vector<8x256xf32>
      %55 = tpu.matmul %53, %12, %cst_34 {dimension_numbers = #tpu.dot_dimension_numbers<[1], [0], [0], [1], [0, 0, 1, 1], [], []>} : vector<8x128xf32>, vector<128x256xf32>, vector<8x256xf32> -> vector<8x256xf32>
      %56 = vector.extract_strided_slice %54 {offsets = [0, 0], sizes = [8, 128], strides = [1, 1]} : vector<8x384xf32> to vector<8x128xf32>
      %57 = vector.extract_strided_slice %55 {offsets = [0, 0], sizes = [8, 128], strides = [1, 1]} : vector<8x256xf32> to vector<8x128xf32>
      %58 = arith.addf %56, %57 : vector<8x128xf32>
      %59 = arith.negf %58 : vector<8x128xf32>
      %60 = math.exp %59 : vector<8x128xf32>
      %cst_35 = arith.constant 1.000000e+00 : f32
      %61 = vector.broadcast %cst_35 : f32 to vector<8x128xf32>
      %62 = arith.addf %61, %60 : vector<8x128xf32>
      %63 = arith.divf %61, %62 : vector<8x128xf32>
      %64 = vector.extract_strided_slice %54 {offsets = [0, 128], sizes = [8, 128], strides = [1, 1]} : vector<8x384xf32> to vector<8x128xf32>
      %65 = vector.extract_strided_slice %55 {offsets = [0, 128], sizes = [8, 128], strides = [1, 1]} : vector<8x256xf32> to vector<8x128xf32>
      %66 = arith.addf %64, %65 : vector<8x128xf32>
      %67 = arith.negf %66 : vector<8x128xf32>
      %68 = math.exp %67 : vector<8x128xf32>
      %cst_36 = arith.constant 1.000000e+00 : f32
      %69 = vector.broadcast %cst_36 : f32 to vector<8x128xf32>
      %70 = arith.addf %69, %68 : vector<8x128xf32>
      %71 = arith.divf %69, %70 : vector<8x128xf32>
      %cst_37 = arith.constant dense<0.000000e+00> : vector<8x128xf32>
      %72 = tpu.matmul %53, %13, %cst_37 {dimension_numbers = #tpu.dot_dimension_numbers<[1], [0], [0], [1], [0, 0, 1, 1], [], []>} : vector<8x128xf32>, vector<128x128xf32>, vector<8x128xf32> -> vector<8x128xf32>
      %73 = vector.extract_strided_slice %54 {offsets = [0, 256], sizes = [8, 128], strides = [1, 1]} : vector<8x384xf32> to vector<8x128xf32>
      %74 = arith.addf %72, %16 : vector<8x128xf32>
      %75 = arith.mulf %63, %74 : vector<8x128xf32>
      %76 = arith.addf %73, %75 : vector<8x128xf32>
      %77 = math.tanh %76 : vector<8x128xf32>
      %78 = arith.subf %53, %77 : vector<8x128xf32>
      %79 = arith.mulf %71, %78 : vector<8x128xf32>
      %80 = arith.addf %77, %79 : vector<8x128xf32>
      %c0_38 = arith.constant 0 : index
      %c0_39 = arith.constant 0 : index
      %81 = vector.load %arg10[%c0_38, %c0_39] : memref<8x128xf32, #tpu.memory_space<vmem>>, vector<8x128xf32>
      tpu.vector_store %arg10[%c0_38, %c0_39], %80 {strides = array<i32>} : memref<8x128xf32, #tpu.memory_space<vmem>>, vector<8x128xf32>,
      %c3 = arith.constant 3 : index
      %c0_40 = arith.constant 0 : index
      %c0_41 = arith.constant 0 : index
      %82 = vector.load %arg8[%c3, %c0_40, %c0_41] : memref<8x8x128xf32, #tpu.memory_space<vmem>>, vector<1x8x128xf32>
      %83 = vector.shape_cast %82 : vector<1x8x128xf32> to vector<8x128xf32>
      %84 = vector.shape_cast %80 : vector<8x128xf32> to vector<1x8x128xf32>
      tpu.vector_store %arg8[%c3, %c0_40, %c0_41], %84 {strides = array<i32>} : memref<8x8x128xf32, #tpu.memory_space<vmem>>, vector<1x8x128xf32>,
    } else {
    }
    %c4_i32 = arith.constant 4 : i32
    %34 = arith.addi %17, %c4_i32 : i32
    %c10_i32_21 = arith.constant 10 : i32
    %35 = arith.cmpi slt, %34, %c10_i32_21 : i32
    %36 = arith.extui %35 : i1 to i32
    %c0_i32_22 = arith.constant 0 : i32
    %37 = arith.cmpi ne, %36, %c0_i32_22 : i32
    scf.if %37 {
      %c0_31 = arith.constant 0 : index
      %c0_32 = arith.constant 0 : index
      %53 = vector.load %arg10[%c0_31, %c0_32] : memref<8x128xf32, #tpu.memory_space<vmem>>, vector<8x128xf32>
      %c32 = arith.constant 32 : index
      %c0_33 = arith.constant 0 : index
      %54 = vector.load %arg11[%c32, %c0_33] : memref<64x384xf32, #tpu.memory_space<vmem>>, vector<8x384xf32>
      %cst_34 = arith.constant dense<0.000000e+00> : vector<8x256xf32>
      %55 = tpu.matmul %53, %12, %cst_34 {dimension_numbers = #tpu.dot_dimension_numbers<[1], [0], [0], [1], [0, 0, 1, 1], [], []>} : vector<8x128xf32>, vector<128x256xf32>, vector<8x256xf32> -> vector<8x256xf32>
      %56 = vector.extract_strided_slice %54 {offsets = [0, 0], sizes = [8, 128], strides = [1, 1]} : vector<8x384xf32> to vector<8x128xf32>
      %57 = vector.extract_strided_slice %55 {offsets = [0, 0], sizes = [8, 128], strides = [1, 1]} : vector<8x256xf32> to vector<8x128xf32>
      %58 = arith.addf %56, %57 : vector<8x128xf32>
      %59 = arith.negf %58 : vector<8x128xf32>
      %60 = math.exp %59 : vector<8x128xf32>
      %cst_35 = arith.constant 1.000000e+00 : f32
      %61 = vector.broadcast %cst_35 : f32 to vector<8x128xf32>
      %62 = arith.addf %61, %60 : vector<8x128xf32>
      %63 = arith.divf %61, %62 : vector<8x128xf32>
      %64 = vector.extract_strided_slice %54 {offsets = [0, 128], sizes = [8, 128], strides = [1, 1]} : vector<8x384xf32> to vector<8x128xf32>
      %65 = vector.extract_strided_slice %55 {offsets = [0, 128], sizes = [8, 128], strides = [1, 1]} : vector<8x256xf32> to vector<8x128xf32>
      %66 = arith.addf %64, %65 : vector<8x128xf32>
      %67 = arith.negf %66 : vector<8x128xf32>
      %68 = math.exp %67 : vector<8x128xf32>
      %cst_36 = arith.constant 1.000000e+00 : f32
      %69 = vector.broadcast %cst_36 : f32 to vector<8x128xf32>
      %70 = arith.addf %69, %68 : vector<8x128xf32>
      %71 = arith.divf %69, %70 : vector<8x128xf32>
      %cst_37 = arith.constant dense<0.000000e+00> : vector<8x128xf32>
      %72 = tpu.matmul %53, %13, %cst_37 {dimension_numbers = #tpu.dot_dimension_numbers<[1], [0], [0], [1], [0, 0, 1, 1], [], []>} : vector<8x128xf32>, vector<128x128xf32>, vector<8x128xf32> -> vector<8x128xf32>
      %73 = vector.extract_strided_slice %54 {offsets = [0, 256], sizes = [8, 128], strides = [1, 1]} : vector<8x384xf32> to vector<8x128xf32>
      %74 = arith.addf %72, %16 : vector<8x128xf32>
      %75 = arith.mulf %63, %74 : vector<8x128xf32>
      %76 = arith.addf %73, %75 : vector<8x128xf32>
      %77 = math.tanh %76 : vector<8x128xf32>
      %78 = arith.subf %53, %77 : vector<8x128xf32>
      %79 = arith.mulf %71, %78 : vector<8x128xf32>
      %80 = arith.addf %77, %79 : vector<8x128xf32>
      %c0_38 = arith.constant 0 : index
      %c0_39 = arith.constant 0 : index
      %81 = vector.load %arg10[%c0_38, %c0_39] : memref<8x128xf32, #tpu.memory_space<vmem>>, vector<8x128xf32>
      tpu.vector_store %arg10[%c0_38, %c0_39], %80 {strides = array<i32>} : memref<8x128xf32, #tpu.memory_space<vmem>>, vector<8x128xf32>,
      %c4 = arith.constant 4 : index
      %c0_40 = arith.constant 0 : index
      %c0_41 = arith.constant 0 : index
      %82 = vector.load %arg8[%c4, %c0_40, %c0_41] : memref<8x8x128xf32, #tpu.memory_space<vmem>>, vector<1x8x128xf32>
      %83 = vector.shape_cast %82 : vector<1x8x128xf32> to vector<8x128xf32>
      %84 = vector.shape_cast %80 : vector<8x128xf32> to vector<1x8x128xf32>
      tpu.vector_store %arg8[%c4, %c0_40, %c0_41], %84 {strides = array<i32>} : memref<8x8x128xf32, #tpu.memory_space<vmem>>, vector<1x8x128xf32>,
    } else {
    }
    %c5_i32 = arith.constant 5 : i32
    %38 = arith.addi %17, %c5_i32 : i32
    %c10_i32_23 = arith.constant 10 : i32
    %39 = arith.cmpi slt, %38, %c10_i32_23 : i32
    %40 = arith.extui %39 : i1 to i32
    %c0_i32_24 = arith.constant 0 : i32
    %41 = arith.cmpi ne, %40, %c0_i32_24 : i32
    scf.if %41 {
      %c0_31 = arith.constant 0 : index
      %c0_32 = arith.constant 0 : index
      %53 = vector.load %arg10[%c0_31, %c0_32] : memref<8x128xf32, #tpu.memory_space<vmem>>, vector<8x128xf32>
      %c40 = arith.constant 40 : index
      %c0_33 = arith.constant 0 : index
      %54 = vector.load %arg11[%c40, %c0_33] : memref<64x384xf32, #tpu.memory_space<vmem>>, vector<8x384xf32>
      %cst_34 = arith.constant dense<0.000000e+00> : vector<8x256xf32>
      %55 = tpu.matmul %53, %12, %cst_34 {dimension_numbers = #tpu.dot_dimension_numbers<[1], [0], [0], [1], [0, 0, 1, 1], [], []>} : vector<8x128xf32>, vector<128x256xf32>, vector<8x256xf32> -> vector<8x256xf32>
      %56 = vector.extract_strided_slice %54 {offsets = [0, 0], sizes = [8, 128], strides = [1, 1]} : vector<8x384xf32> to vector<8x128xf32>
      %57 = vector.extract_strided_slice %55 {offsets = [0, 0], sizes = [8, 128], strides = [1, 1]} : vector<8x256xf32> to vector<8x128xf32>
      %58 = arith.addf %56, %57 : vector<8x128xf32>
      %59 = arith.negf %58 : vector<8x128xf32>
      %60 = math.exp %59 : vector<8x128xf32>
      %cst_35 = arith.constant 1.000000e+00 : f32
      %61 = vector.broadcast %cst_35 : f32 to vector<8x128xf32>
      %62 = arith.addf %61, %60 : vector<8x128xf32>
      %63 = arith.divf %61, %62 : vector<8x128xf32>
      %64 = vector.extract_strided_slice %54 {offsets = [0, 128], sizes = [8, 128], strides = [1, 1]} : vector<8x384xf32> to vector<8x128xf32>
      %65 = vector.extract_strided_slice %55 {offsets = [0, 128], sizes = [8, 128], strides = [1, 1]} : vector<8x256xf32> to vector<8x128xf32>
      %66 = arith.addf %64, %65 : vector<8x128xf32>
      %67 = arith.negf %66 : vector<8x128xf32>
      %68 = math.exp %67 : vector<8x128xf32>
      %cst_36 = arith.constant 1.000000e+00 : f32
      %69 = vector.broadcast %cst_36 : f32 to vector<8x128xf32>
      %70 = arith.addf %69, %68 : vector<8x128xf32>
      %71 = arith.divf %69, %70 : vector<8x128xf32>
      %cst_37 = arith.constant dense<0.000000e+00> : vector<8x128xf32>
      %72 = tpu.matmul %53, %13, %cst_37 {dimension_numbers = #tpu.dot_dimension_numbers<[1], [0], [0], [1], [0, 0, 1, 1], [], []>} : vector<8x128xf32>, vector<128x128xf32>, vector<8x128xf32> -> vector<8x128xf32>
      %73 = vector.extract_strided_slice %54 {offsets = [0, 256], sizes = [8, 128], strides = [1, 1]} : vector<8x384xf32> to vector<8x128xf32>
      %74 = arith.addf %72, %16 : vector<8x128xf32>
      %75 = arith.mulf %63, %74 : vector<8x128xf32>
      %76 = arith.addf %73, %75 : vector<8x128xf32>
      %77 = math.tanh %76 : vector<8x128xf32>
      %78 = arith.subf %53, %77 : vector<8x128xf32>
      %79 = arith.mulf %71, %78 : vector<8x128xf32>
      %80 = arith.addf %77, %79 : vector<8x128xf32>
      %c0_38 = arith.constant 0 : index
      %c0_39 = arith.constant 0 : index
      %81 = vector.load %arg10[%c0_38, %c0_39] : memref<8x128xf32, #tpu.memory_space<vmem>>, vector<8x128xf32>
      tpu.vector_store %arg10[%c0_38, %c0_39], %80 {strides = array<i32>} : memref<8x128xf32, #tpu.memory_space<vmem>>, vector<8x128xf32>,
      %c5 = arith.constant 5 : index
      %c0_40 = arith.constant 0 : index
      %c0_41 = arith.constant 0 : index
      %82 = vector.load %arg8[%c5, %c0_40, %c0_41] : memref<8x8x128xf32, #tpu.memory_space<vmem>>, vector<1x8x128xf32>
      %83 = vector.shape_cast %82 : vector<1x8x128xf32> to vector<8x128xf32>
      %84 = vector.shape_cast %80 : vector<8x128xf32> to vector<1x8x128xf32>
      tpu.vector_store %arg8[%c5, %c0_40, %c0_41], %84 {strides = array<i32>} : memref<8x8x128xf32, #tpu.memory_space<vmem>>, vector<1x8x128xf32>,
    } else {
    }
    %c6_i32 = arith.constant 6 : i32
    %42 = arith.addi %17, %c6_i32 : i32
    %c10_i32_25 = arith.constant 10 : i32
    %43 = arith.cmpi slt, %42, %c10_i32_25 : i32
    %44 = arith.extui %43 : i1 to i32
    %c0_i32_26 = arith.constant 0 : i32
    %45 = arith.cmpi ne, %44, %c0_i32_26 : i32
    scf.if %45 {
      %c0_31 = arith.constant 0 : index
      %c0_32 = arith.constant 0 : index
      %53 = vector.load %arg10[%c0_31, %c0_32] : memref<8x128xf32, #tpu.memory_space<vmem>>, vector<8x128xf32>
      %c48 = arith.constant 48 : index
      %c0_33 = arith.constant 0 : index
      %54 = vector.load %arg11[%c48, %c0_33] : memref<64x384xf32, #tpu.memory_space<vmem>>, vector<8x384xf32>
      %cst_34 = arith.constant dense<0.000000e+00> : vector<8x256xf32>
      %55 = tpu.matmul %53, %12, %cst_34 {dimension_numbers = #tpu.dot_dimension_numbers<[1], [0], [0], [1], [0, 0, 1, 1], [], []>} : vector<8x128xf32>, vector<128x256xf32>, vector<8x256xf32> -> vector<8x256xf32>
      %56 = vector.extract_strided_slice %54 {offsets = [0, 0], sizes = [8, 128], strides = [1, 1]} : vector<8x384xf32> to vector<8x128xf32>
      %57 = vector.extract_strided_slice %55 {offsets = [0, 0], sizes = [8, 128], strides = [1, 1]} : vector<8x256xf32> to vector<8x128xf32>
      %58 = arith.addf %56, %57 : vector<8x128xf32>
      %59 = arith.negf %58 : vector<8x128xf32>
      %60 = math.exp %59 : vector<8x128xf32>
      %cst_35 = arith.constant 1.000000e+00 : f32
      %61 = vector.broadcast %cst_35 : f32 to vector<8x128xf32>
      %62 = arith.addf %61, %60 : vector<8x128xf32>
      %63 = arith.divf %61, %62 : vector<8x128xf32>
      %64 = vector.extract_strided_slice %54 {offsets = [0, 128], sizes = [8, 128], strides = [1, 1]} : vector<8x384xf32> to vector<8x128xf32>
      %65 = vector.extract_strided_slice %55 {offsets = [0, 128], sizes = [8, 128], strides = [1, 1]} : vector<8x256xf32> to vector<8x128xf32>
      %66 = arith.addf %64, %65 : vector<8x128xf32>
      %67 = arith.negf %66 : vector<8x128xf32>
      %68 = math.exp %67 : vector<8x128xf32>
      %cst_36 = arith.constant 1.000000e+00 : f32
      %69 = vector.broadcast %cst_36 : f32 to vector<8x128xf32>
      %70 = arith.addf %69, %68 : vector<8x128xf32>
      %71 = arith.divf %69, %70 : vector<8x128xf32>
      %cst_37 = arith.constant dense<0.000000e+00> : vector<8x128xf32>
      %72 = tpu.matmul %53, %13, %cst_37 {dimension_numbers = #tpu.dot_dimension_numbers<[1], [0], [0], [1], [0, 0, 1, 1], [], []>} : vector<8x128xf32>, vector<128x128xf32>, vector<8x128xf32> -> vector<8x128xf32>
      %73 = vector.extract_strided_slice %54 {offsets = [0, 256], sizes = [8, 128], strides = [1, 1]} : vector<8x384xf32> to vector<8x128xf32>
      %74 = arith.addf %72, %16 : vector<8x128xf32>
      %75 = arith.mulf %63, %74 : vector<8x128xf32>
      %76 = arith.addf %73, %75 : vector<8x128xf32>
      %77 = math.tanh %76 : vector<8x128xf32>
      %78 = arith.subf %53, %77 : vector<8x128xf32>
      %79 = arith.mulf %71, %78 : vector<8x128xf32>
      %80 = arith.addf %77, %79 : vector<8x128xf32>
      %c0_38 = arith.constant 0 : index
      %c0_39 = arith.constant 0 : index
      %81 = vector.load %arg10[%c0_38, %c0_39] : memref<8x128xf32, #tpu.memory_space<vmem>>, vector<8x128xf32>
      tpu.vector_store %arg10[%c0_38, %c0_39], %80 {strides = array<i32>} : memref<8x128xf32, #tpu.memory_space<vmem>>, vector<8x128xf32>,
      %c6 = arith.constant 6 : index
      %c0_40 = arith.constant 0 : index
      %c0_41 = arith.constant 0 : index
      %82 = vector.load %arg8[%c6, %c0_40, %c0_41] : memref<8x8x128xf32, #tpu.memory_space<vmem>>, vector<1x8x128xf32>
      %83 = vector.shape_cast %82 : vector<1x8x128xf32> to vector<8x128xf32>
      %84 = vector.shape_cast %80 : vector<8x128xf32> to vector<1x8x128xf32>
      tpu.vector_store %arg8[%c6, %c0_40, %c0_41], %84 {strides = array<i32>} : memref<8x8x128xf32, #tpu.memory_space<vmem>>, vector<1x8x128xf32>,
    } else {
    }
    %c7_i32 = arith.constant 7 : i32
    %46 = arith.addi %17, %c7_i32 : i32
    %c10_i32_27 = arith.constant 10 : i32
    %47 = arith.cmpi slt, %46, %c10_i32_27 : i32
    %48 = arith.extui %47 : i1 to i32
    %c0_i32_28 = arith.constant 0 : i32
    %49 = arith.cmpi ne, %48, %c0_i32_28 : i32
    scf.if %49 {
      %c0_31 = arith.constant 0 : index
      %c0_32 = arith.constant 0 : index
      %53 = vector.load %arg10[%c0_31, %c0_32] : memref<8x128xf32, #tpu.memory_space<vmem>>, vector<8x128xf32>
      %c56 = arith.constant 56 : index
      %c0_33 = arith.constant 0 : index
      %54 = vector.load %arg11[%c56, %c0_33] : memref<64x384xf32, #tpu.memory_space<vmem>>, vector<8x384xf32>
      %cst_34 = arith.constant dense<0.000000e+00> : vector<8x256xf32>
      %55 = tpu.matmul %53, %12, %cst_34 {dimension_numbers = #tpu.dot_dimension_numbers<[1], [0], [0], [1], [0, 0, 1, 1], [], []>} : vector<8x128xf32>, vector<128x256xf32>, vector<8x256xf32> -> vector<8x256xf32>
      %56 = vector.extract_strided_slice %54 {offsets = [0, 0], sizes = [8, 128], strides = [1, 1]} : vector<8x384xf32> to vector<8x128xf32>
      %57 = vector.extract_strided_slice %55 {offsets = [0, 0], sizes = [8, 128], strides = [1, 1]} : vector<8x256xf32> to vector<8x128xf32>
      %58 = arith.addf %56, %57 : vector<8x128xf32>
      %59 = arith.negf %58 : vector<8x128xf32>
      %60 = math.exp %59 : vector<8x128xf32>
      %cst_35 = arith.constant 1.000000e+00 : f32
      %61 = vector.broadcast %cst_35 : f32 to vector<8x128xf32>
      %62 = arith.addf %61, %60 : vector<8x128xf32>
      %63 = arith.divf %61, %62 : vector<8x128xf32>
      %64 = vector.extract_strided_slice %54 {offsets = [0, 128], sizes = [8, 128], strides = [1, 1]} : vector<8x384xf32> to vector<8x128xf32>
      %65 = vector.extract_strided_slice %55 {offsets = [0, 128], sizes = [8, 128], strides = [1, 1]} : vector<8x256xf32> to vector<8x128xf32>
      %66 = arith.addf %64, %65 : vector<8x128xf32>
      %67 = arith.negf %66 : vector<8x128xf32>
      %68 = math.exp %67 : vector<8x128xf32>
      %cst_36 = arith.constant 1.000000e+00 : f32
      %69 = vector.broadcast %cst_36 : f32 to vector<8x128xf32>
      %70 = arith.addf %69, %68 : vector<8x128xf32>
      %71 = arith.divf %69, %70 : vector<8x128xf32>
      %cst_37 = arith.constant dense<0.000000e+00> : vector<8x128xf32>
      %72 = tpu.matmul %53, %13, %cst_37 {dimension_numbers = #tpu.dot_dimension_numbers<[1], [0], [0], [1], [0, 0, 1, 1], [], []>} : vector<8x128xf32>, vector<128x128xf32>, vector<8x128xf32> -> vector<8x128xf32>
      %73 = vector.extract_strided_slice %54 {offsets = [0, 256], sizes = [8, 128], strides = [1, 1]} : vector<8x384xf32> to vector<8x128xf32>
      %74 = arith.addf %72, %16 : vector<8x128xf32>
      %75 = arith.mulf %63, %74 : vector<8x128xf32>
      %76 = arith.addf %73, %75 : vector<8x128xf32>
      %77 = math.tanh %76 : vector<8x128xf32>
      %78 = arith.subf %53, %77 : vector<8x128xf32>
      %79 = arith.mulf %71, %78 : vector<8x128xf32>
      %80 = arith.addf %77, %79 : vector<8x128xf32>
      %c0_38 = arith.constant 0 : index
      %c0_39 = arith.constant 0 : index
      %81 = vector.load %arg10[%c0_38, %c0_39] : memref<8x128xf32, #tpu.memory_space<vmem>>, vector<8x128xf32>
      tpu.vector_store %arg10[%c0_38, %c0_39], %80 {strides = array<i32>} : memref<8x128xf32, #tpu.memory_space<vmem>>, vector<8x128xf32>,
      %c7 = arith.constant 7 : index
      %c0_40 = arith.constant 0 : index
      %c0_41 = arith.constant 0 : index
      %82 = vector.load %arg8[%c7, %c0_40, %c0_41] : memref<8x8x128xf32, #tpu.memory_space<vmem>>, vector<1x8x128xf32>
      %83 = vector.shape_cast %82 : vector<1x8x128xf32> to vector<8x128xf32>
      %84 = vector.shape_cast %80 : vector<8x128xf32> to vector<1x8x128xf32>
      tpu.vector_store %arg8[%c7, %c0_40, %c0_41], %84 {strides = array<i32>} : memref<8x8x128xf32, #tpu.memory_space<vmem>>, vector<1x8x128xf32>,
    } else {
    }
    %c1_i32_29 = arith.constant 1 : i32
    %50 = arith.cmpi eq, %arg1, %c1_i32_29 : i32
    %51 = arith.extui %50 : i1 to i32
    %c0_i32_30 = arith.constant 0 : i32
    %52 = arith.cmpi ne, %51, %c0_i32_30 : i32
    scf.if %52 {
      %c0_31 = arith.constant 0 : index
      %c0_32 = arith.constant 0 : index
      %53 = vector.load %arg10[%c0_31, %c0_32] : memref<8x128xf32, #tpu.memory_space<vmem>>, vector<8x128xf32>
      %c0_33 = arith.constant 0 : index
      %c0_34 = arith.constant 0 : index
      %c0_35 = arith.constant 0 : index
      %54 = vector.load %arg9[%c0_33, %c0_34, %c0_35] : memref<1x8x128xf32, #tpu.memory_space<vmem>>, vector<1x8x128xf32>
      %55 = vector.shape_cast %54 : vector<1x8x128xf32> to vector<8x128xf32>
      %56 = vector.shape_cast %53 : vector<8x128xf32> to vector<1x8x128xf32>
      tpu.vector_store %arg9[%c0_33, %c0_34, %c0_35], %56 {strides = array<i32>} : memref<1x8x128xf32, #tpu.memory_space<vmem>>, vector<1x8x128xf32>,
    } else {
    }
    return
  }
  func.func @transform_0(%arg0: i32, %arg1: i32) -> (i32, i32, i32) {
    %c0_i32 = arith.constant 0 : i32
    %c0_i32_0 = arith.constant 0 : i32
    return %arg1, %arg0, %c0_i32 : i32, i32, i32
  }
  func.func @transform_1(%arg0: i32, %arg1: i32) -> (i32, i32, i32) {
    %c0_i32 = arith.constant 0 : i32
    %c0_i32_0 = arith.constant 0 : i32
    %c0_i32_1 = arith.constant 0 : i32
    return %c0_i32, %arg0, %c0_i32_0 : i32, i32, i32
  }
  func.func @transform_2(%arg0: i32, %arg1: i32) -> (i32, i32) {
    %c0_i32 = arith.constant 0 : i32
    %c0_i32_0 = arith.constant 0 : i32
    %c0_i32_1 = arith.constant 0 : i32
    return %c0_i32, %c0_i32_0 : i32, i32
  }
  func.func @transform_3(%arg0: i32, %arg1: i32) -> (i32, i32) {
    %c0_i32 = arith.constant 0 : i32
    %c0_i32_0 = arith.constant 0 : i32
    %c0_i32_1 = arith.constant 0 : i32
    return %c0_i32, %c0_i32_0 : i32, i32
  }
  func.func @transform_4(%arg0: i32, %arg1: i32) -> (i32, i32) {
    %c0_i32 = arith.constant 0 : i32
    %c0_i32_0 = arith.constant 0 : i32
    %c0_i32_1 = arith.constant 0 : i32
    return %c0_i32, %c0_i32_0 : i32, i32
  }
  func.func @transform_5(%arg0: i32, %arg1: i32) -> (i32, i32) {
    %c0_i32 = arith.constant 0 : i32
    %c0_i32_0 = arith.constant 0 : i32
    %c0_i32_1 = arith.constant 0 : i32
    return %c0_i32, %c0_i32_0 : i32, i32
  }
  func.func @transform_6(%arg0: i32, %arg1: i32) -> (i32, i32, i32) {
    %c0_i32 = arith.constant 0 : i32
    %c0_i32_0 = arith.constant 0 : i32
    return %arg1, %arg0, %c0_i32 : i32, i32, i32
  }
  func.func @transform_7(%arg0: i32, %arg1: i32) -> (i32, i32, i32) {
    %c0_i32 = arith.constant 0 : i32
    %c0_i32_0 = arith.constant 0 : i32
    %c0_i32_1 = arith.constant 0 : i32
    return %c0_i32, %arg0, %c0_i32_0 : i32, i32, i32
  }
}

</mosaic_0001>

<llo_original>
// kernel: encoder_rnn_forward.1
$region0: #{encoder_rnn_forward.1}
  #allocation0 [shape = 'u32[]', space=smem, size = 0x4, offset = 0x4, fixed_abs, tag = 'smem constant byte address 0x4 - core index']
  #allocation1 [shape = 'u32[144,128]{1,0:T(1,128)}', space=vmem, size = 0x12000, scoped, tag = 'internal scratch']
  #allocation2 [shape = 'f32[8,128]{1,0:T(8,128)}', space=vmem, size = 0x1000, scoped, tag = 'scratch operand']
  #allocation3 [shape = 'f32[64,384]{1,0:T(8,128)}', space=vmem, size = 0x18000, scoped, tag = 'scratch operand']
  %s0 = inlined_call_operand.vmem [shape: f32[16,8,16], index: 0, kind: input, shape index: {}]
  %s1 = inlined_call_operand.vmem [shape: f32[1,8,128], index: 1, kind: input, shape index: {}]
  %s2 = inlined_call_operand.vmem [shape: f32[16,384], index: 2, kind: input, shape index: {}]
  %s3 = inlined_call_operand.vmem [shape: f32[1,384], index: 3, kind: input, shape index: {}]
  %s4 = inlined_call_operand.vmem [shape: f32[128,384], index: 4, kind: input, shape index: {}]
  %s5 = inlined_call_operand.vmem [shape: f32[1,128], index: 5, kind: input, shape index: {}]
  %s6 = inlined_call_operand.vmem [shape: f32[16,8,128], index: 6, kind: output, shape index: {0}]
  %s7 = inlined_call_operand.vmem [shape: f32[1,8,128], index: 7, kind: output, shape index: {1}]
  %8 = xla_tuple %s6, %s7
  %s9 = sld [smem:[#allocation0]]
  $region105: #{encoder_rnn_forward.1} parent=0
    _
  %s11 = ssub.s32 1, %s9
  %s12 = scalar_select 0, %s11, %s9
  loop: start=0, step=1, limit=4
  $region2: #{encoder_rnn_forward.1} parent=0 // loop_pre_header
    _
  $region3: #{encoder_rnn_forward.1} parent=0 // loop_header
    %s14 = sphi 0, %s18
    %p15 = scmp.ge.s32.totalorder %s14, 4
    %s21 = sphi 0, %s33
    %s22 = sphi 0, %s29
    %s23 = sphi 0, %s21
    %s24 = sphi 0, %s22
    %s25 = sphi 0, %s23
    %s26 = sphi 0, %s24
    %s38 = sphi 0, %s40
    %s41 = sphi 0, %s38
    %s42 = sphi 0, %s41
    %s58 = sphi 0, %s42
    %s64 = sphi 0, %s66
    %s67 = sphi 0, %s64
    %s68 = sphi 0, %s67
    %s84 = sphi 0, %s68
    %s88 = sphi 0, %s88
    %s90 = sphi 0, %s88
    %s91 = sphi 0, %s90
    %s105 = sphi 0, %s91
    %s109 = sphi 0, %s109
    %s111 = sphi 0, %s109
    %s112 = sphi 0, %s111
    %s126 = sphi 0, %s112
    %s130 = sphi 0, %s130
    %s132 = sphi 0, %s130
    %s133 = sphi 0, %s132
    %s147 = sphi 0, %s133
    %s151 = sphi 0, %s151
    %s153 = sphi 0, %s151
    %s154 = sphi 0, %s153
    %s168 = sphi 0, %s154
    %s176 = sphi 0, %s178
    %s179 = sphi 0, %s176
    %s180 = sphi 0, %s179
    %s196 = sphi 0, %s180
    %s202 = sphi 0, %s204
    %s205 = sphi 0, %s202
    %s206 = sphi 0, %s205
    %s222 = sphi 0, %s206
  $region4: #{encoder_rnn_forward.1} parent=0 // loop_header_branch
    %17 = sbr.rel (%p15) target = $region8
  $region5: #{encoder_rnn_forward.1} parent=0 // loop_body
    %s19 = ssub.s32 %s14, 1
    %s20 = ssub.s32 %s14, 2
    %s27 = sadd.s32 1, %s22
    %p28 = scmp.ge.s32.totalorder %s27, 2
    %s29 = scalar_select %p28, 0, %s27
    %s30 = sadd.s32 1, %s21
    %s31 = scalar_select %p28, %s30, %s21
    %p32 = scmp.ge.s32.totalorder %s31, 1
    %s33 = scalar_select %p32, 0, %s31
    %s34 = ssub.s32 %s22, %s29
    %s35 = ssub.s32 %s21, %s33
    %s36 = sor.u32 %s34, %s35
    %p37 = scmp.eq.s32.totalorder %s36, 0
    %s39 = sadd.s32 %s38, 1
    %s40 = scalar_select %p37, %s38, %s39
    %p43 = pneg %p37
    %p44 = scmp.eq.s32.totalorder %s14, 1
    %p45 = por %p43, %p44
    %p46 = scmp.ne.s32.totalorder %s38, %s41
    %p47 = scmp.eq.s32.totalorder %s14, 0
    %p48 = por %p46, %p47
    %p49 = scmp.ne.s32.totalorder %s38, %s41
    %p50 = scmp.eq.s32.totalorder %s19, 1
    %p51 = por %p49, %p50
    %p52 = scmp.ne.s32.totalorder %s41, %s42
    %p53 = scmp.eq.s32.totalorder %s19, 0
    %p54 = por %p52, %p53
    %p55 = scmp.ne.s32.totalorder %s41, %s42
    %p56 = scmp.eq.s32.totalorder %s20, 1
    %p57 = por %p55, %p56
    %p59 = scmp.ne.s32.totalorder %s42, %s58
    %p60 = scmp.eq.s32.totalorder %s20, 0
    %p61 = por %p59, %p60
    %s62 = ssub.s32 %s21, %s33
    %p63 = scmp.eq.s32.totalorder %s62, 0
    %s65 = sadd.s32 %s64, 1
    %s66 = scalar_select %p63, %s64, %s65
    %p69 = pneg %p63
    %p70 = scmp.eq.s32.totalorder %s14, 1
    %p71 = por %p69, %p70
    %p72 = scmp.ne.s32.totalorder %s64, %s67
    %p73 = scmp.eq.s32.totalorder %s14, 0
    %p74 = por %p72, %p73
    %p75 = scmp.ne.s32.totalorder %s64, %s67
    %p76 = scmp.eq.s32.totalorder %s19, 1
    %p77 = por %p75, %p76
    %p78 = scmp.ne.s32.totalorder %s67, %s68
    %p79 = scmp.eq.s32.totalorder %s19, 0
    %p80 = por %p78, %p79
    %p81 = scmp.ne.s32.totalorder %s67, %s68
    %p82 = scmp.eq.s32.totalorder %s20, 1
    %p83 = por %p81, %p82
    %p85 = scmp.ne.s32.totalorder %s68, %s84
    %p86 = scmp.eq.s32.totalorder %s20, 0
    %p87 = por %p85, %p86
    %s89 = sadd.s32 %s88, 1
    %p92 = scmp.eq.s32.totalorder %s14, 1
    %p93 = scmp.ne.s32.totalorder %s88, %s90
    %p94 = scmp.eq.s32.totalorder %s14, 0
    %p95 = por %p93, %p94
    %p96 = scmp.ne.s32.totalorder %s88, %s90
    %p97 = scmp.eq.s32.totalorder %s19, 1
    %p98 = por %p96, %p97
    %p99 = scmp.ne.s32.totalorder %s90, %s91
    %p100 = scmp.eq.s32.totalorder %s19, 0
    %p101 = por %p99, %p100
    %p102 = scmp.ne.s32.totalorder %s90, %s91
    %p103 = scmp.eq.s32.totalorder %s20, 1
    %p104 = por %p102, %p103
    %p106 = scmp.ne.s32.totalorder %s91, %s105
    %p107 = scmp.eq.s32.totalorder %s20, 0
    %p108 = por %p106, %p107
    %s110 = sadd.s32 %s109, 1
    %p113 = scmp.eq.s32.totalorder %s14, 1
    %p114 = scmp.ne.s32.totalorder %s109, %s111
    %p115 = scmp.eq.s32.totalorder %s14, 0
    %p116 = por %p114, %p115
    %p117 = scmp.ne.s32.totalorder %s109, %s111
    %p118 = scmp.eq.s32.totalorder %s19, 1
    %p119 = por %p117, %p118
    %p120 = scmp.ne.s32.totalorder %s111, %s112
    %p121 = scmp.eq.s32.totalorder %s19, 0
    %p122 = por %p120, %p121
    %p123 = scmp.ne.s32.totalorder %s111, %s112
    %p124 = scmp.eq.s32.totalorder %s20, 1
    %p125 = por %p123, %p124
    %p127 = scmp.ne.s32.totalorder %s112, %s126
    %p128 = scmp.eq.s32.totalorder %s20, 0
    %p129 = por %p127, %p128
    %s131 = sadd.s32 %s130, 1
    %p134 = scmp.eq.s32.totalorder %s14, 1
    %p135 = scmp.ne.s32.totalorder %s130, %s132
    %p136 = scmp.eq.s32.totalorder %s14, 0
    %p137 = por %p135, %p136
    %p138 = scmp.ne.s32.totalorder %s130, %s132
    %p139 = scmp.eq.s32.totalorder %s19, 1
    %p140 = por %p138, %p139
    %p141 = scmp.ne.s32.totalorder %s132, %s133
    %p142 = scmp.eq.s32.totalorder %s19, 0
    %p143 = por %p141, %p142
    %p144 = scmp.ne.s32.totalorder %s132, %s133
    %p145 = scmp.eq.s32.totalorder %s20, 1
    %p146 = por %p144, %p145
    %p148 = scmp.ne.s32.totalorder %s133, %s147
    %p149 = scmp.eq.s32.totalorder %s20, 0
    %p150 = por %p148, %p149
    %s152 = sadd.s32 %s151, 1
    %p155 = scmp.eq.s32.totalorder %s14, 1
    %p156 = scmp.ne.s32.totalorder %s151, %s153
    %p157 = scmp.eq.s32.totalorder %s14, 0
    %p158 = por %p156, %p157
    %p159 = scmp.ne.s32.totalorder %s151, %s153
    %p160 = scmp.eq.s32.totalorder %s19, 1
    %p161 = por %p159, %p160
    %p162 = scmp.ne.s32.totalorder %s153, %s154
    %p163 = scmp.eq.s32.totalorder %s19, 0
    %p164 = por %p162, %p163
    %p165 = scmp.ne.s32.totalorder %s153, %s154
    %p166 = scmp.eq.s32.totalorder %s20, 1
    %p167 = por %p165, %p166
    %p169 = scmp.ne.s32.totalorder %s154, %s168
    %p170 = scmp.eq.s32.totalorder %s20, 0
    %p171 = por %p169, %p170
    %s172 = ssub.s32 %s22, %s29
    %s173 = ssub.s32 %s21, %s33
    %s174 = sor.u32 %s172, %s173
    %p175 = scmp.eq.s32.totalorder %s174, 0
    %s177 = sadd.s32 %s176, 1
    %s178 = scalar_select %p175, %s176, %s177
    %p181 = pneg %p175
    %p182 = scmp.eq.s32.totalorder %s14, 1
    %p183 = por %p181, %p182
    %p184 = scmp.ne.s32.totalorder %s176, %s179
    %p185 = scmp.eq.s32.totalorder %s14, 0
    %p186 = por %p184, %p185
    %p187 = scmp.ne.s32.totalorder %s176, %s179
    %p188 = scmp.eq.s32.totalorder %s19, 1
    %p189 = por %p187, %p188
    %p190 = scmp.ne.s32.totalorder %s179, %s180
    %p191 = scmp.eq.s32.totalorder %s19, 0
    %p192 = por %p190, %p191
    %p193 = scmp.ne.s32.totalorder %s179, %s180
    %p194 = scmp.eq.s32.totalorder %s20, 1
    %p195 = por %p193, %p194
    %p197 = scmp.ne.s32.totalorder %s180, %s196
    %p198 = scmp.eq.s32.totalorder %s20, 0
    %p199 = por %p197, %p198
    %s200 = ssub.s32 %s21, %s33
    %p201 = scmp.eq.s32.totalorder %s200, 0
    %s203 = sadd.s32 %s202, 1
    %s204 = scalar_select %p201, %s202, %s203
    %p207 = pneg %p201
    %p208 = scmp.eq.s32.totalorder %s14, 1
    %p209 = por %p207, %p208
    %p210 = scmp.ne.s32.totalorder %s202, %s205
    %p211 = scmp.eq.s32.totalorder %s14, 0
    %p212 = por %p210, %p211
    %p213 = scmp.ne.s32.totalorder %s202, %s205
    %p214 = scmp.eq.s32.totalorder %s19, 1
    %p215 = por %p213, %p214
    %p216 = scmp.ne.s32.totalorder %s205, %s206
    %p217 = scmp.eq.s32.totalorder %s19, 0
    %p218 = por %p216, %p217
    %p219 = scmp.ne.s32.totalorder %s205, %s206
    %p220 = scmp.eq.s32.totalorder %s20, 1
    %p221 = por %p219, %p220
    %p223 = scmp.ne.s32.totalorder %s206, %s222
    %p224 = scmp.eq.s32.totalorder %s20, 0
    %p225 = por %p223, %p224
    %p226 = scmp.le.s32.totalorder 1, %s14
    %p227 = scmp.lt.s32.totalorder %s14, 3
    %p228 = pnand %p226, %p227
    %p229 = pneg %p228
    // Predicated region
    $region9: #{encoder_rnn_forward.1} parent=5 // pred_check
      _
    $region10: #{encoder_rnn_forward.1} parent=5 // pred_check_branch
      %231 = sbr.rel (%p228) target = $region12
    $region11: #{encoder_rnn_forward.1} parent=5 // pred_region
      %s232 = ssub.s32 %s14, 1
      // Predicated region
      $region13: #{encoder_rnn_forward.1} parent=11 // pred_check
        %p233 = pneg %p80
      $region14: #{encoder_rnn_forward.1} parent=11 // pred_check_branch
        %235 = sbr.rel (%p233) target = $region16
      $region15: #{encoder_rnn_forward.1} parent=11 // pred_region
        %p236 = scmp.lt.s32.totalorder %s23, 0
        %s237 = scalar_select %p236, %s23, 0
        %s238 = smul.addr %s237, 8
        %s239 = scalar_lea.vmem %s1, %s238
      $region16: #{encoder_rnn_forward.1} parent=11 // pred_fallthru
        _
      // Predicated region
      $region17: #{encoder_rnn_forward.1} parent=11 // pred_check
        %p240 = pneg %p101
      $region18: #{encoder_rnn_forward.1} parent=11 // pred_check_branch
        %242 = sbr.rel (%p240) target = $region20
      $region19: #{encoder_rnn_forward.1} parent=11 // pred_region
        _
      $region20: #{encoder_rnn_forward.1} parent=11 // pred_fallthru
        _
      // Predicated region
      $region21: #{encoder_rnn_forward.1} parent=11 // pred_check
        %p243 = pneg %p122
      $region22: #{encoder_rnn_forward.1} parent=11 // pred_check_branch
        %245 = sbr.rel (%p243) target = $region24
      $region23: #{encoder_rnn_forward.1} parent=11 // pred_region
        _
      $region24: #{encoder_rnn_forward.1} parent=11 // pred_fallthru
        _
      // Predicated region
      $region25: #{encoder_rnn_forward.1} parent=11 // pred_check
        %p246 = pneg %p143
      $region26: #{encoder_rnn_forward.1} parent=11 // pred_check_branch
        %248 = sbr.rel (%p246) target = $region28
      $region27: #{encoder_rnn_forward.1} parent=11 // pred_region
        _
      $region28: #{encoder_rnn_forward.1} parent=11 // pred_fallthru
        _
      // Predicated region
      $region29: #{encoder_rnn_forward.1} parent=11 // pred_check
        %p249 = pneg %p164
      $region30: #{encoder_rnn_forward.1} parent=11 // pred_check_branch
        %251 = sbr.rel (%p249) target = $region32
      $region31: #{encoder_rnn_forward.1} parent=11 // pred_region
        _
      $region32: #{encoder_rnn_forward.1} parent=11 // pred_fallthru
        _
    $region12: #{encoder_rnn_forward.1} parent=5 // pred_fallthru
      _
    %p252 = scmp.lt.s32.totalorder %s14, 2
    // Predicated region
    $region33: #{encoder_rnn_forward.1} parent=5 // pred_check
      %p253 = pneg %p252
    $region34: #{encoder_rnn_forward.1} parent=5 // pred_check_branch
      %255 = sbr.rel (%p253) target = $region36
    $region35: #{encoder_rnn_forward.1} parent=5 // pred_region
      // Predicated region
      $region37: #{encoder_rnn_forward.1} parent=35 // pred_check
        %p256 = pneg %p48
      $region38: #{encoder_rnn_forward.1} parent=35 // pred_check_branch
        %258 = sbr.rel (%p256) target = $region40
      $region39: #{encoder_rnn_forward.1} parent=35 // pred_region
        %s259 = smul.u32 8, %s22
        %p260 = scmp.lt.s32.totalorder %s259, 15
        %s261 = scalar_select %p260, %s259, 15
        %p262 = scmp.lt.s32.totalorder %s21, 0
        %s263 = scalar_select %p262, %s21, 0
        %s264 = sadd.s32 %s263, %s261
        %s265 = smul.addr %s264, 8
        %s266 = scalar_lea.vmem %s0, %s265
        %s267 = smul.u32 8, %s22
      $region40: #{encoder_rnn_forward.1} parent=35 // pred_fallthru
        _
    $region36: #{encoder_rnn_forward.1} parent=5 // pred_fallthru
      _
    %p268 = scmp.le.s32.totalorder 1, %s14
    %p269 = scmp.lt.s32.totalorder %s14, 3
    %p270 = pnand %p268, %p269
    %p271 = pneg %p270
    // Predicated region
    $region41: #{encoder_rnn_forward.1} parent=5 // pred_check
      _
    $region42: #{encoder_rnn_forward.1} parent=5 // pred_check_branch
      %273 = sbr.rel (%p270) target = $region44
    $region43: #{encoder_rnn_forward.1} parent=5 // pred_region
      %s274 = ssub.s32 %s14, 1
      %s275 = smul.u32 8, %s24
      %p276 = scmp.lt.s32.totalorder %s275, 15
      %s277 = scalar_select %p276, %s275, 15
      %p278 = scmp.lt.s32.totalorder %s23, 0
      %s279 = scalar_select %p278, %s23, 0
      %s280 = sadd.s32 %s279, %s277
      %s281 = smul.addr %s280, 8
      %s282 = scalar_lea.vmem %s0, %s281
      %p283 = pneg %p54
      %p284 = pneg %p51
      %p285 = scmp.lt.s32.totalorder %s23, 0
      %s286 = scalar_select %p285, %s23, 0
      %s287 = smul.addr %s286, 8
      %s288 = scalar_lea.vmem %s1, %s287
      %p289 = pneg %p80
      %p290 = pneg %p77
      %p291 = pneg %p101
      %p292 = pneg %p98
      %p293 = pneg %p122
      %p294 = pneg %p119
      %p295 = pneg %p143
      %p296 = pneg %p140
      %p297 = pneg %p164
      %p298 = pneg %p161
      %p299 = pneg %p192
      %p300 = pneg %p189
      %s301 = smul.u32 8, %s24
      %p302 = scmp.lt.s32.totalorder %s301, 15
      %s303 = scalar_select %p302, %s301, 15
      %p304 = scmp.lt.s32.totalorder %s23, 0
      %s305 = scalar_select %p304, %s23, 0
      %s306 = sadd.s32 %s305, %s303
      %s307 = smul.addr %s306, 8
      %s308 = scalar_lea.vmem %s6, %s307
      %p309 = pneg %p218
      %p310 = pneg %p215
      %p311 = scmp.lt.s32.totalorder %s23, 0
      %s312 = scalar_select %p311, %s23, 0
      %s313 = smul.addr %s312, 8
      %s314 = scalar_lea.vmem %s7, %s313
      %s315 = smul.u32 8, %s24
      %p316 = scmp.lt.s32.totalorder %s315, 15
      %s317 = scalar_select %p316, %s315, 15
      %p318 = scmp.lt.s32.totalorder %s23, 0
      %s319 = scalar_select %p318, %s23, 0
      %s320 = sadd.s32 %s319, %s317
      %s321 = smul.addr %s320, 8
      %s322 = scalar_lea.vmem %s0, %s321
      %s323 = smul.u32 8, %s24
      %p324 = scmp.lt.s32.totalorder %s23, 0
      %s325 = scalar_select %p324, %s23, 0
      %s326 = smul.addr %s325, 8
      %s327 = scalar_lea.vmem %s1, %s326
      %s328 = smul.u32 8, %s24
      %p329 = scmp.lt.s32.totalorder %s328, 15
      %s330 = scalar_select %p329, %s328, 15
      %p331 = scmp.lt.s32.totalorder %s23, 0
      %s332 = scalar_select %p331, %s23, 0
      %s333 = sadd.s32 %s332, %s330
      %s334 = smul.addr %s333, 8
      %s335 = scalar_lea.vmem %s6, %s334
      %s336 = smul.u32 8, %s24
      %p337 = scmp.lt.s32.totalorder %s23, 0
      %s338 = scalar_select %p337, %s23, 0
      %s339 = smul.addr %s338, 8
      %s340 = scalar_lea.vmem %s7, %s339
      %p341 = scmp.eq.s32.totalorder %s24, 0
      // Predicated region
      $region45: #{encoder_rnn_forward.1} parent=43 // pred_check
        %p342 = pneg %p341
      $region46: #{encoder_rnn_forward.1} parent=43 // pred_check_branch
        %344 = sbr.rel (%p342) target = $region48
      $region47: #{encoder_rnn_forward.1} parent=43 // pred_region
        %v345 = vld [vmem:[%s327] sm:$0xff]
        %346 = vst [vmem:[#allocation2] sm:$0xff] %v345
      $region48: #{encoder_rnn_forward.1} parent=43 // pred_fallthru
        _
      %v347 = vld [vmem:[%s322] sm:$0xff]
      %v348 = vld [vmem:[%s322 + $0x8] sm:$0xff]
      %v349 = vld [vmem:[%s322 + $0x10] sm:$0xff]
      %v350 = vld [vmem:[%s322 + $0x18] sm:$0xff]
      %v351 = vld [vmem:[%s322 + $0x20] sm:$0xff]
      %v352 = vld [vmem:[%s322 + $0x28] sm:$0xff]
      %v353 = vld [vmem:[%s322 + $0x30] sm:$0xff]
      %v354 = vld [vmem:[%s322 + $0x38] sm:$0xff]
      %v355 = vld [vmem:[%s2] sm:$0xff]
      %v356 = vld [vmem:[%s2 + $0x8] sm:$0xff]
      %v357 = vld [vmem:[%s2 + $0x10] sm:$0xff]
      %v358 = vld [vmem:[%s2 + $0x18] sm:$0xff]
      %v359 = vld [vmem:[%s2 + $0x20] sm:$0xff]
      %v360 = vld [vmem:[%s2 + $0x28] sm:$0xff]
      %v361 = vld [vmem:[%s3] sm:$0x7]
      %v363 = vlaneseq
      %v364 = vshrl.u32 %v363, 7
      %v365 = vsub.s32 0, %v364
      %v366 = vrot.slane %v361, %v365
      %v367 = vlaneseq
      %v368 = vshrl.u32 %v367, 7
      %v369 = vsub.s32 1, %v368
      %v370 = vrot.slane %v361, %v369
      %v371 = vlaneseq
      %v372 = vshrl.u32 %v371, 7
      %v373 = vsub.s32 2, %v372
      %v374 = vrot.slane %v361, %v373
      %vm378 = vcmask 130048
      %v380 = vsel %vm378, %v347, 0
      %v383 = vsel %vm378, %v348, 0
      %v386 = vsel %vm378, %v349, 0
      %v389 = vsel %vm378, %v350, 0
      %v392 = vsel %vm378, %v351, 0
      %v395 = vsel %vm378, %v352, 0
      %v398 = vsel %vm378, %v353, 0
      %v401 = vsel %vm378, %v354, 0
      %403 = vmatprep.subr.mxu0 %v356
      %404 = vmatpush1.msra.mxu0 %v355
      %405 = vmatprep.subr.mxu0 %v359
      %406 = vmatpush1.msra.mxu0 %v358
      %407 = vmatprep.subr.mxu0 0.0
      %408 = vmatpush1.msra.mxu0 0.0
      %409 = vmatprep.subr.mxu0 0.0
      %410 = vmatpush1.msra.mxu0 0.0
      %411 = vmatprep.subr.mxu0 0.0
      %412 = vmatpush1.msra.mxu0 0.0
      %413 = vmatprep.subr.mxu0 0.0
      %414 = vmatpush1.msra.mxu0 0.0
      %415 = vmatprep.subr.mxu0 0.0
      %416 = vmatpush1.msra.mxu0 0.0
      %417 = vmatprep.subr.mxu0 0.0
      %418 = vmatpush1.msra.mxu0 0.0
      %419 = vmatprep.subr.mxu0 0.0
      %420 = vmatpush1.msra.mxu0 0.0
      %421 = vmatprep.subr.mxu0 0.0
      %422 = vmatpush1.msra.mxu0 0.0
      %423 = vmatprep.subr.mxu0 0.0
      %424 = vmatpush1.msra.mxu0 0.0
      %425 = vmatprep.subr.mxu0 0.0
      %426 = vmatpush1.msra.mxu0 0.0
      %427 = vmatprep.subr.mxu0 0.0
      %428 = vmatpush1.msra.mxu0 0.0
      %429 = vmatprep.subr.mxu0 0.0
      %430 = vmatpush1.msra.mxu0 0.0
      %431 = vmatprep.subr.mxu0 0.0
      %432 = vmatpush1.msra.mxu0 0.0
      %433 = vmatprep.subr.mxu0 0.0
      %434 = vmatpush1.msra.mxu0 0.0
      %435 = vmatprep.subr.mxu0 0.0
      %436 = vmatpush1.msra.mxu0 0.0
      %437 = vmatprep.subr.mxu0 0.0
      %438 = vmatpush1.msra.mxu0 0.0
      %439 = vmatprep.subr.mxu0 0.0
      %440 = vmatpush1.msra.mxu0 0.0
      %441 = vmatprep.subr.mxu0 0.0
      %442 = vmatpush1.msra.mxu0 0.0
      %443 = vmatprep.subr.mxu0 0.0
      %444 = vmatpush1.msra.mxu0 0.0
      %445 = vmatprep.subr.mxu0 0.0
      %446 = vmatpush1.msra.mxu0 0.0
      %447 = vmatprep.subr.mxu0 0.0
      %448 = vmatpush1.msra.mxu0 0.0
      %449 = vmatprep.subr.mxu0 0.0
      %450 = vmatpush1.msra.mxu0 0.0
      %451 = vmatprep.subr.mxu0 0.0
      %452 = vmatpush1.msra.mxu0 0.0
      %453 = vmatprep.subr.mxu0 0.0
      %454 = vmatpush1.msra.mxu0 0.0
      %455 = vmatprep.subr.mxu0 0.0
      %456 = vmatpush1.msra.mxu0 0.0
      %457 = vmatprep.subr.mxu0 0.0
      %458 = vmatpush1.msra.mxu0 0.0
      %459 = vmatprep.subr.mxu0 0.0
      %460 = vmatpush1.msra.mxu0 0.0
      %461 = vmatprep.subr.mxu0 0.0
      %462 = vmatpush1.msra.mxu0 0.0
      %463 = vmatprep.subr.mxu0 0.0
      %464 = vmatpush1.msra.mxu0 0.0
      %465 = vmatprep.subr.mxu0 0.0
      %466 = vmatpush1.msra.mxu0 0.0
      %467 = vmatprep.mubr.f32.mxu0 0.0
      %468 = vmatmul.mubr.f32.gmra.mrb[0].mxu0 %v380
      %v469 = vpop.f32.mrb[0].mxu0
      %v470 = vadd.f32 %v366, %v469
      %v471 = vpop.f32.mrb[0].mxu0
      %v472 = vadd.f32 %v370, %v471
      %473 = vmatprep.mubr.f32.mxu0 0.0
      %474 = vmatmul.mubr.f32.gmra.mrb[0].mxu0 %v383
      %v475 = vpop.f32.mrb[0].mxu0
      %v476 = vadd.f32 %v366, %v475
      %v477 = vpop.f32.mrb[0].mxu0
      %v478 = vadd.f32 %v370, %v477
      %479 = vmatprep.mubr.f32.mxu0 0.0
      %480 = vmatmul.mubr.f32.gmra.mrb[0].mxu0 %v386
      %v481 = vpop.f32.mrb[0].mxu0
      %v482 = vadd.f32 %v366, %v481
      %v483 = vpop.f32.mrb[0].mxu0
      %v484 = vadd.f32 %v370, %v483
      %485 = vmatprep.mubr.f32.mxu0 0.0
      %486 = vmatmul.mubr.f32.gmra.mrb[0].mxu0 %v389
      %v487 = vpop.f32.mrb[0].mxu0
      %v488 = vadd.f32 %v366, %v487
      %v489 = vpop.f32.mrb[0].mxu0
      %v490 = vadd.f32 %v370, %v489
      %491 = vmatprep.mubr.f32.mxu0 0.0
      %492 = vmatmul.mubr.f32.gmra.mrb[0].mxu0 %v392
      %v493 = vpop.f32.mrb[0].mxu0
      %v494 = vadd.f32 %v366, %v493
      %v495 = vpop.f32.mrb[0].mxu0
      %v496 = vadd.f32 %v370, %v495
      %497 = vmatprep.mubr.f32.mxu0 0.0
      %498 = vmatmul.mubr.f32.gmra.mrb[0].mxu0 %v395
      %v499 = vpop.f32.mrb[0].mxu0
      %v500 = vadd.f32 %v366, %v499
      %v501 = vpop.f32.mrb[0].mxu0
      %v502 = vadd.f32 %v370, %v501
      %503 = vmatprep.mubr.f32.mxu0 0.0
      %504 = vmatmul.mubr.f32.gmra.mrb[0].mxu0 %v398
      %v505 = vpop.f32.mrb[0].mxu0
      %v506 = vadd.f32 %v366, %v505
      %v507 = vpop.f32.mrb[0].mxu0
      %v508 = vadd.f32 %v370, %v507
      %509 = vmatprep.mubr.f32.mxu0 0.0
      %510 = vmatmul.mubr.f32.gmra.mrb[0].mxu0 %v401
      %v511 = vpop.f32.mrb[0].mxu0
      %v512 = vadd.f32 %v366, %v511
      %v513 = vpop.f32.mrb[0].mxu0
      %v514 = vadd.f32 %v370, %v513
      %515 = vdwg.mxu0
      %516 = vmatprep.subr.mxu0 0.0
      %517 = vmatpush1.msra.mxu0 %v357
      %518 = vmatprep.subr.mxu0 0.0
      %519 = vmatpush1.msra.mxu0 %v360
      %520 = vmatprep.subr.mxu0 0.0
      %521 = vmatpush1.msra.mxu0 0.0
      %522 = vmatprep.subr.mxu0 0.0
      %523 = vmatpush1.msra.mxu0 0.0
      %524 = vmatprep.subr.mxu0 0.0
      %525 = vmatpush1.msra.mxu0 0.0
      %526 = vmatprep.subr.mxu0 0.0
      %527 = vmatpush1.msra.mxu0 0.0
      %528 = vmatprep.subr.mxu0 0.0
      %529 = vmatpush1.msra.mxu0 0.0
      %530 = vmatprep.subr.mxu0 0.0
      %531 = vmatpush1.msra.mxu0 0.0
      %532 = vmatprep.subr.mxu0 0.0
      %533 = vmatpush1.msra.mxu0 0.0
      %534 = vmatprep.subr.mxu0 0.0
      %535 = vmatpush1.msra.mxu0 0.0
      %536 = vmatprep.subr.mxu0 0.0
      %537 = vmatpush1.msra.mxu0 0.0
      %538 = vmatprep.subr.mxu0 0.0
      %539 = vmatpush1.msra.mxu0 0.0
      %540 = vmatprep.subr.mxu0 0.0
      %541 = vmatpush1.msra.mxu0 0.0
      %542 = vmatprep.subr.mxu0 0.0
      %543 = vmatpush1.msra.mxu0 0.0
      %544 = vmatprep.subr.mxu0 0.0
      %545 = vmatpush1.msra.mxu0 0.0
      %546 = vmatprep.subr.mxu0 0.0
      %547 = vmatpush1.msra.mxu0 0.0
      %548 = vmatprep.subr.mxu0 0.0
      %549 = vmatpush1.msra.mxu0 0.0
      %550 = vmatprep.subr.mxu0 0.0
      %551 = vmatpush1.msra.mxu0 0.0
      %552 = vmatprep.subr.mxu0 0.0
      %553 = vmatpush1.msra.mxu0 0.0
      %554 = vmatprep.subr.mxu0 0.0
      %555 = vmatpush1.msra.mxu0 0.0
      %556 = vmatprep.subr.mxu0 0.0
      %557 = vmatpush1.msra.mxu0 0.0
      %558 = vmatprep.subr.mxu0 0.0
      %559 = vmatpush1.msra.mxu0 0.0
      %560 = vmatprep.subr.mxu0 0.0
      %561 = vmatpush1.msra.mxu0 0.0
      %562 = vmatprep.subr.mxu0 0.0
      %563 = vmatpush1.msra.mxu0 0.0
      %564 = vmatprep.subr.mxu0 0.0
      %565 = vmatpush1.msra.mxu0 0.0
      %566 = vmatprep.subr.mxu0 0.0
      %567 = vmatpush1.msra.mxu0 0.0
      %568 = vmatprep.subr.mxu0 0.0
      %569 = vmatpush1.msra.mxu0 0.0
      %570 = vmatprep.subr.mxu0 0.0
      %571 = vmatpush1.msra.mxu0 0.0
      %572 = vmatprep.subr.mxu0 0.0
      %573 = vmatpush1.msra.mxu0 0.0
      %574 = vmatprep.subr.mxu0 0.0
      %575 = vmatpush1.msra.mxu0 0.0
      %576 = vmatprep.subr.mxu0 0.0
      %577 = vmatpush1.msra.mxu0 0.0
      %578 = vmatprep.subr.mxu0 0.0
      %579 = vmatpush1.msra.mxu0 0.0
      %580 = vmatprep.mubr.f32.mxu0 0.0
      %581 = vmatmul.mubr.f32.gmra.mrb[0].mxu0 %v380
      %v582 = vpop.f32.mrb[0].mxu0
      %v583 = vadd.f32 %v374, %v582
      %v584 = vpop.f32.mrb[0].mxu0
      %585 = vmatprep.mubr.f32.mxu0 0.0
      %586 = vmatmul.mubr.f32.gmra.mrb[0].mxu0 %v383
      %v587 = vpop.f32.mrb[0].mxu0
      %v588 = vadd.f32 %v374, %v587
      %v589 = vpop.f32.mrb[0].mxu0
      %590 = vmatprep.mubr.f32.mxu0 0.0
      %591 = vmatmul.mubr.f32.gmra.mrb[0].mxu0 %v386
      %v592 = vpop.f32.mrb[0].mxu0
      %v593 = vadd.f32 %v374, %v592
      %v594 = vpop.f32.mrb[0].mxu0
      %595 = vmatprep.mubr.f32.mxu0 0.0
      %596 = vmatmul.mubr.f32.gmra.mrb[0].mxu0 %v389
      %v597 = vpop.f32.mrb[0].mxu0
      %v598 = vadd.f32 %v374, %v597
      %v599 = vpop.f32.mrb[0].mxu0
      %600 = vmatprep.mubr.f32.mxu0 0.0
      %601 = vmatmul.mubr.f32.gmra.mrb[0].mxu0 %v392
      %v602 = vpop.f32.mrb[0].mxu0
      %v603 = vadd.f32 %v374, %v602
      %v604 = vpop.f32.mrb[0].mxu0
      %605 = vmatprep.mubr.f32.mxu0 0.0
      %606 = vmatmul.mubr.f32.gmra.mrb[0].mxu0 %v395
      %v607 = vpop.f32.mrb[0].mxu0
      %v608 = vadd.f32 %v374, %v607
      %v609 = vpop.f32.mrb[0].mxu0
      %610 = vmatprep.mubr.f32.mxu0 0.0
      %611 = vmatmul.mubr.f32.gmra.mrb[0].mxu0 %v398
      %v612 = vpop.f32.mrb[0].mxu0
      %v613 = vadd.f32 %v374, %v612
      %v614 = vpop.f32.mrb[0].mxu0
      %615 = vmatprep.mubr.f32.mxu0 0.0
      %616 = vmatmul.mubr.f32.gmra.mrb[0].mxu0 %v401
      %v617 = vpop.f32.mrb[0].mxu0
      %v618 = vadd.f32 %v374, %v617
      %v619 = vpop.f32.mrb[0].mxu0
      %620 = vdwg.mxu0
      %621 = vst [vmem:[#allocation3] sm:$0xff] %v470
      %622 = vst [vmem:[#allocation3 + $0x8] sm:$0xff] %v472
      %623 = vst [vmem:[#allocation3 + $0x10] sm:$0xff] %v583
      %624 = vst [vmem:[#allocation3 + $0x18] sm:$0xff] %v476
      %625 = vst [vmem:[#allocation3 + $0x20] sm:$0xff] %v478
      %626 = vst [vmem:[#allocation3 + $0x28] sm:$0xff] %v588
      %627 = vst [vmem:[#allocation3 + $0x30] sm:$0xff] %v482
      %628 = vst [vmem:[#allocation3 + $0x38] sm:$0xff] %v484
      %629 = vst [vmem:[#allocation3 + $0x40] sm:$0xff] %v593
      %630 = vst [vmem:[#allocation3 + $0x48] sm:$0xff] %v488
      %631 = vst [vmem:[#allocation3 + $0x50] sm:$0xff] %v490
      %632 = vst [vmem:[#allocation3 + $0x58] sm:$0xff] %v598
      %633 = vst [vmem:[#allocation3 + $0x60] sm:$0xff] %v494
      %634 = vst [vmem:[#allocation3 + $0x68] sm:$0xff] %v496
      %635 = vst [vmem:[#allocation3 + $0x70] sm:$0xff] %v603
      %636 = vst [vmem:[#allocation3 + $0x78] sm:$0xff] %v500
      %637 = vst [vmem:[#allocation3 + $0x80] sm:$0xff] %v502
      %638 = vst [vmem:[#allocation3 + $0x88] sm:$0xff] %v608
      %639 = vst [vmem:[#allocation3 + $0x90] sm:$0xff] %v506
      %640 = vst [vmem:[#allocation3 + $0x98] sm:$0xff] %v508
      %641 = vst [vmem:[#allocation3 + $0xa0] sm:$0xff] %v613
      %642 = vst [vmem:[#allocation3 + $0xa8] sm:$0xff] %v512
      %643 = vst [vmem:[#allocation3 + $0xb0] sm:$0xff] %v514
      %644 = vst [vmem:[#allocation3 + $0xb8] sm:$0xff] %v618
      %v645 = vld [vmem:[%s4] sm:$0xff]
      %v646 = vld [vmem:[%s4 + $0x8] sm:$0xff]
      %v647 = vld [vmem:[%s4 + $0x10] sm:$0xff]
      %v648 = vld [vmem:[%s4 + $0x18] sm:$0xff]
      %v649 = vld [vmem:[%s4 + $0x20] sm:$0xff]
      %v650 = vld [vmem:[%s4 + $0x28] sm:$0xff]
      %v651 = vld [vmem:[%s4 + $0x30] sm:$0xff]
      %v652 = vld [vmem:[%s4 + $0x38] sm:$0xff]
      %v653 = vld [vmem:[%s4 + $0x40] sm:$0xff]
      %v654 = vld [vmem:[%s4 + $0x48] sm:$0xff]
      %v655 = vld [vmem:[%s4 + $0x50] sm:$0xff]
      %v656 = vld [vmem:[%s4 + $0x58] sm:$0xff]
      %v657 = vld [vmem:[%s4 + $0x60] sm:$0xff]
      %v658 = vld [vmem:[%s4 + $0x68] sm:$0xff]
      %v659 = vld [vmem:[%s4 + $0x70] sm:$0xff]
      %v660 = vld [vmem:[%s4 + $0x78] sm:$0xff]
      %v661 = vld [vmem:[%s4 + $0x80] sm:$0xff]
      %v662 = vld [vmem:[%s4 + $0x88] sm:$0xff]
      %v663 = vld [vmem:[%s4 + $0x90] sm:$0xff]
      %v664 = vld [vmem:[%s4 + $0x98] sm:$0xff]
      %v665 = vld [vmem:[%s4 + $0xa0] sm:$0xff]
      %v666 = vld [vmem:[%s4 + $0xa8] sm:$0xff]
      %v667 = vld [vmem:[%s4 + $0xb0] sm:$0xff]
      %v668 = vld [vmem:[%s4 + $0xb8] sm:$0xff]
      %v669 = vld [vmem:[%s4 + $0xc0] sm:$0xff]
      %v670 = vld [vmem:[%s4 + $0xc8] sm:$0xff]
      %v671 = vld [vmem:[%s4 + $0xd0] sm:$0xff]
      %v672 = vld [vmem:[%s4 + $0xd8] sm:$0xff]
      %v673 = vld [vmem:[%s4 + $0xe0] sm:$0xff]
      %v674 = vld [vmem:[%s4 + $0xe8] sm:$0xff]
      %v675 = vld [vmem:[%s4 + $0xf0] sm:$0xff]
      %v676 = vld [vmem:[%s4 + $0xf8] sm:$0xff]
      %v677 = vld [vmem:[%s4 + $0x100] sm:$0xff]
      %v678 = vld [vmem:[%s4 + $0x108] sm:$0xff]
      %v679 = vld [vmem:[%s4 + $0x110] sm:$0xff]
      %v680 = vld [vmem:[%s4 + $0x118] sm:$0xff]
      %v681 = vld [vmem:[%s4 + $0x120] sm:$0xff]
      %v682 = vld [vmem:[%s4 + $0x128] sm:$0xff]
      %v683 = vld [vmem:[%s4 + $0x130] sm:$0xff]
      %v684 = vld [vmem:[%s4 + $0x138] sm:$0xff]
      %v685 = vld [vmem:[%s4 + $0x140] sm:$0xff]
      %v686 = vld [vmem:[%s4 + $0x148] sm:$0xff]
      %v687 = vld [vmem:[%s4 + $0x150] sm:$0xff]
      %v688 = vld [vmem:[%s4 + $0x158] sm:$0xff]
      %v689 = vld [vmem:[%s4 + $0x160] sm:$0xff]
      %v690 = vld [vmem:[%s4 + $0x168] sm:$0xff]
      %v691 = vld [vmem:[%s4 + $0x170] sm:$0xff]
      %v692 = vld [vmem:[%s4 + $0x178] sm:$0xff]
      %v693 = vld [vmem:[%s5] sm:$0x1]
      %v695 = vlaneseq
      %v696 = vshrl.u32 %v695, 7
      %v697 = vsub.s32 0, %v696
      %v698 = vrot.slane %v693, %v697
      %s700 = smul.u32 %s24, 8
      %p701 = scmp.lt.s32.totalorder %s700, 10
      // Predicated region
      $region49: #{encoder_rnn_forward.1} parent=43 // pred_check
        %p702 = pneg %p701
      $region50: #{encoder_rnn_forward.1} parent=43 // pred_check_branch
        %704 = sbr.rel (%p702) target = $region52
      $region51: #{encoder_rnn_forward.1} parent=43 // pred_region
        %v705 = vld [vmem:[#allocation2] sm:$0xff]
        %v706 = vld [vmem:[#allocation3] sm:$0xff]
        %v707 = vld [vmem:[#allocation3 + $0x8] sm:$0xff]
        %v708 = vld [vmem:[#allocation3 + $0x10] sm:$0xff]
        %709 = vmatprep.subr.mxu0 %v646
        %710 = vmatpush1.msra.mxu0 %v645
        %711 = vmatprep.subr.mxu0 %v649
        %712 = vmatpush1.msra.mxu0 %v648
        %713 = vmatprep.subr.mxu0 %v652
        %714 = vmatpush1.msra.mxu0 %v651
        %715 = vmatprep.subr.mxu0 %v655
        %716 = vmatpush1.msra.mxu0 %v654
        %717 = vmatprep.subr.mxu0 %v658
        %718 = vmatpush1.msra.mxu0 %v657
        %719 = vmatprep.subr.mxu0 %v661
        %720 = vmatpush1.msra.mxu0 %v660
        %721 = vmatprep.subr.mxu0 %v664
        %722 = vmatpush1.msra.mxu0 %v663
        %723 = vmatprep.subr.mxu0 %v667
        %724 = vmatpush1.msra.mxu0 %v666
        %725 = vmatprep.subr.mxu0 %v670
        %726 = vmatpush1.msra.mxu0 %v669
        %727 = vmatprep.subr.mxu0 %v673
        %728 = vmatpush1.msra.mxu0 %v672
        %729 = vmatprep.subr.mxu0 %v676
        %730 = vmatpush1.msra.mxu0 %v675
        %731 = vmatprep.subr.mxu0 %v679
        %732 = vmatpush1.msra.mxu0 %v678
        %733 = vmatprep.subr.mxu0 %v682
        %734 = vmatpush1.msra.mxu0 %v681
        %735 = vmatprep.subr.mxu0 %v685
        %736 = vmatpush1.msra.mxu0 %v684
        %737 = vmatprep.subr.mxu0 %v688
        %738 = vmatpush1.msra.mxu0 %v687
        %739 = vmatprep.subr.mxu0 %v691
        %740 = vmatpush1.msra.mxu0 %v690
        %741 = vmatprep.subr.mxu0 0.0
        %742 = vmatpush1.msra.mxu0 0.0
        %743 = vmatprep.subr.mxu0 0.0
        %744 = vmatpush1.msra.mxu0 0.0
        %745 = vmatprep.subr.mxu0 0.0
        %746 = vmatpush1.msra.mxu0 0.0
        %747 = vmatprep.subr.mxu0 0.0
        %748 = vmatpush1.msra.mxu0 0.0
        %749 = vmatprep.subr.mxu0 0.0
        %750 = vmatpush1.msra.mxu0 0.0
        %751 = vmatprep.subr.mxu0 0.0
        %752 = vmatpush1.msra.mxu0 0.0
        %753 = vmatprep.subr.mxu0 0.0
        %754 = vmatpush1.msra.mxu0 0.0
        %755 = vmatprep.subr.mxu0 0.0
        %756 = vmatpush1.msra.mxu0 0.0
        %757 = vmatprep.subr.mxu0 0.0
        %758 = vmatpush1.msra.mxu0 0.0
        %759 = vmatprep.subr.mxu0 0.0
        %760 = vmatpush1.msra.mxu0 0.0
        %761 = vmatprep.subr.mxu0 0.0
        %762 = vmatpush1.msra.mxu0 0.0
        %763 = vmatprep.subr.mxu0 0.0
        %764 = vmatpush1.msra.mxu0 0.0
        %765 = vmatprep.subr.mxu0 0.0
        %766 = vmatpush1.msra.mxu0 0.0
        %767 = vmatprep.subr.mxu0 0.0
        %768 = vmatpush1.msra.mxu0 0.0
        %769 = vmatprep.subr.mxu0 0.0
        %770 = vmatpush1.msra.mxu0 0.0
        %771 = vmatprep.subr.mxu0 0.0
        %772 = vmatpush1.msra.mxu0 0.0
        %773 = vmatprep.mubr.f32.mxu0 0.0
        %774 = vmatmul.mubr.f32.gmra.mrb[0].mxu0 %v705
        %v775 = vpop.f32.mrb[0].mxu0
        %v776 = vadd.f32 0.0, %v775
        %v777 = vpop.f32.mrb[0].mxu0
        %v778 = vadd.f32 0.0, %v777
        %779 = vdwg.mxu0
        %v780 = vadd.f32 %v706, %v776
        %v781 = vxor.u32 %v780, 2147483648
        %v782 = vmul.f32 %v781, 1.442695
        %v783 = vpow.pop %v782
        %v784 = vadd.f32 %v783, 1.0
        %v785 = vrcp.pop %v784
        %v786 = vmul.f32 1.0, %v785
        %v787 = vadd.f32 %v707, %v778
        %v788 = vxor.u32 %v787, 2147483648
        %v789 = vmul.f32 %v788, 1.442695
        %v790 = vpow.pop %v789
        %v791 = vadd.f32 %v790, 1.0
        %v792 = vrcp.pop %v791
        %v793 = vmul.f32 1.0, %v792
        %794 = vmatprep.subr.mxu0 0.0
        %795 = vmatpush1.msra.mxu0 %v647
        %796 = vmatprep.subr.mxu0 0.0
        %797 = vmatpush1.msra.mxu0 %v650
        %798 = vmatprep.subr.mxu0 0.0
        %799 = vmatpush1.msra.mxu0 %v653
        %800 = vmatprep.subr.mxu0 0.0
        %801 = vmatpush1.msra.mxu0 %v656
        %802 = vmatprep.subr.mxu0 0.0
        %803 = vmatpush1.msra.mxu0 %v659
        %804 = vmatprep.subr.mxu0 0.0
        %805 = vmatpush1.msra.mxu0 %v662
        %806 = vmatprep.subr.mxu0 0.0
        %807 = vmatpush1.msra.mxu0 %v665
        %808 = vmatprep.subr.mxu0 0.0
        %809 = vmatpush1.msra.mxu0 %v668
        %810 = vmatprep.subr.mxu0 0.0
        %811 = vmatpush1.msra.mxu0 %v671
        %812 = vmatprep.subr.mxu0 0.0
        %813 = vmatpush1.msra.mxu0 %v674
        %814 = vmatprep.subr.mxu0 0.0
        %815 = vmatpush1.msra.mxu0 %v677
        %816 = vmatprep.subr.mxu0 0.0
        %817 = vmatpush1.msra.mxu0 %v680
        %818 = vmatprep.subr.mxu0 0.0
        %819 = vmatpush1.msra.mxu0 %v683
        %820 = vmatprep.subr.mxu0 0.0
        %821 = vmatpush1.msra.mxu0 %v686
        %822 = vmatprep.subr.mxu0 0.0
        %823 = vmatpush1.msra.mxu0 %v689
        %824 = vmatprep.subr.mxu0 0.0
        %825 = vmatpush1.msra.mxu0 %v692
        %826 = vmatprep.subr.mxu0 0.0
        %827 = vmatpush1.msra.mxu0 0.0
        %828 = vmatprep.subr.mxu0 0.0
        %829 = vmatpush1.msra.mxu0 0.0
        %830 = vmatprep.subr.mxu0 0.0
        %831 = vmatpush1.msra.mxu0 0.0
        %832 = vmatprep.subr.mxu0 0.0
        %833 = vmatpush1.msra.mxu0 0.0
        %834 = vmatprep.subr.mxu0 0.0
        %835 = vmatpush1.msra.mxu0 0.0
        %836 = vmatprep.subr.mxu0 0.0
        %837 = vmatpush1.msra.mxu0 0.0
        %838 = vmatprep.subr.mxu0 0.0
        %839 = vmatpush1.msra.mxu0 0.0
        %840 = vmatprep.subr.mxu0 0.0
        %841 = vmatpush1.msra.mxu0 0.0
        %842 = vmatprep.subr.mxu0 0.0
        %843 = vmatpush1.msra.mxu0 0.0
        %844 = vmatprep.subr.mxu0 0.0
        %845 = vmatpush1.msra.mxu0 0.0
        %846 = vmatprep.subr.mxu0 0.0
        %847 = vmatpush1.msra.mxu0 0.0
        %848 = vmatprep.subr.mxu0 0.0
        %849 = vmatpush1.msra.mxu0 0.0
        %850 = vmatprep.subr.mxu0 0.0
        %851 = vmatpush1.msra.mxu0 0.0
        %852 = vmatprep.subr.mxu0 0.0
        %853 = vmatpush1.msra.mxu0 0.0
        %854 = vmatprep.subr.mxu0 0.0
        %855 = vmatpush1.msra.mxu0 0.0
        %856 = vmatprep.subr.mxu0 0.0
        %857 = vmatpush1.msra.mxu0 0.0
        %858 = vmatprep.mubr.f32.mxu0 0.0
        %859 = vmatmul.mubr.f32.gmra.mrb[0].mxu0 %v705
        %v860 = vpop.f32.mrb[0].mxu0
        %v861 = vadd.f32 %v698, %v860
        %v862 = vpop.f32.mrb[0].mxu0
        %863 = vdwg.mxu0
        %v864 = vmul.f32 %v786, %v861
        %v865 = vadd.f32 %v708, %v864
        %v866 = vtanh.pop %v865
        %v867 = vsub.f32 %v705, %v866
        %v868 = vmul.f32 %v793, %v867
        %v869 = vadd.f32 %v866, %v868
        %870 = vst [vmem:[#allocation2] sm:$0xff] %v869
        %871 = vst [vmem:[%s335] sm:$0xff] %v869
      $region52: #{encoder_rnn_forward.1} parent=43 // pred_fallthru
        _
      %s872 = sadd.s32 %s700, 1
      %p873 = scmp.lt.s32.totalorder %s872, 10
      // Predicated region
      $region53: #{encoder_rnn_forward.1} parent=43 // pred_check
        %p874 = pneg %p873
      $region54: #{encoder_rnn_forward.1} parent=43 // pred_check_branch
        %876 = sbr.rel (%p874) target = $region56
      $region55: #{encoder_rnn_forward.1} parent=43 // pred_region
        %v877 = vld [vmem:[#allocation2] sm:$0xff]
        %v878 = vld [vmem:[#allocation3 + $0x18] sm:$0xff]
        %v879 = vld [vmem:[#allocation3 + $0x20] sm:$0xff]
        %v880 = vld [vmem:[#allocation3 + $0x28] sm:$0xff]
        %881 = vmatprep.subr.mxu0 %v646
        %882 = vmatpush1.msra.mxu0 %v645
        %883 = vmatprep.subr.mxu0 %v649
        %884 = vmatpush1.msra.mxu0 %v648
        %885 = vmatprep.subr.mxu0 %v652
        %886 = vmatpush1.msra.mxu0 %v651
        %887 = vmatprep.subr.mxu0 %v655
        %888 = vmatpush1.msra.mxu0 %v654
        %889 = vmatprep.subr.mxu0 %v658
        %890 = vmatpush1.msra.mxu0 %v657
        %891 = vmatprep.subr.mxu0 %v661
        %892 = vmatpush1.msra.mxu0 %v660
        %893 = vmatprep.subr.mxu0 %v664
        %894 = vmatpush1.msra.mxu0 %v663
        %895 = vmatprep.subr.mxu0 %v667
        %896 = vmatpush1.msra.mxu0 %v666
        %897 = vmatprep.subr.mxu0 %v670
        %898 = vmatpush1.msra.mxu0 %v669
        %899 = vmatprep.subr.mxu0 %v673
        %900 = vmatpush1.msra.mxu0 %v672
        %901 = vmatprep.subr.mxu0 %v676
        %902 = vmatpush1.msra.mxu0 %v675
        %903 = vmatprep.subr.mxu0 %v679
        %904 = vmatpush1.msra.mxu0 %v678
        %905 = vmatprep.subr.mxu0 %v682
        %906 = vmatpush1.msra.mxu0 %v681
        %907 = vmatprep.subr.mxu0 %v685
        %908 = vmatpush1.msra.mxu0 %v684
        %909 = vmatprep.subr.mxu0 %v688
        %910 = vmatpush1.msra.mxu0 %v687
        %911 = vmatprep.subr.mxu0 %v691
        %912 = vmatpush1.msra.mxu0 %v690
        %913 = vmatprep.subr.mxu0 0.0
        %914 = vmatpush1.msra.mxu0 0.0
        %915 = vmatprep.subr.mxu0 0.0
        %916 = vmatpush1.msra.mxu0 0.0
        %917 = vmatprep.subr.mxu0 0.0
        %918 = vmatpush1.msra.mxu0 0.0
        %919 = vmatprep.subr.mxu0 0.0
        %920 = vmatpush1.msra.mxu0 0.0
        %921 = vmatprep.subr.mxu0 0.0
        %922 = vmatpush1.msra.mxu0 0.0
        %923 = vmatprep.subr.mxu0 0.0
        %924 = vmatpush1.msra.mxu0 0.0
        %925 = vmatprep.subr.mxu0 0.0
        %926 = vmatpush1.msra.mxu0 0.0
        %927 = vmatprep.subr.mxu0 0.0
        %928 = vmatpush1.msra.mxu0 0.0
        %929 = vmatprep.subr.mxu0 0.0
        %930 = vmatpush1.msra.mxu0 0.0
        %931 = vmatprep.subr.mxu0 0.0
        %932 = vmatpush1.msra.mxu0 0.0
        %933 = vmatprep.subr.mxu0 0.0
        %934 = vmatpush1.msra.mxu0 0.0
        %935 = vmatprep.subr.mxu0 0.0
        %936 = vmatpush1.msra.mxu0 0.0
        %937 = vmatprep.subr.mxu0 0.0
        %938 = vmatpush1.msra.mxu0 0.0
        %939 = vmatprep.subr.mxu0 0.0
        %940 = vmatpush1.msra.mxu0 0.0
        %941 = vmatprep.subr.mxu0 0.0
        %942 = vmatpush1.msra.mxu0 0.0
        %943 = vmatprep.subr.mxu0 0.0
        %944 = vmatpush1.msra.mxu0 0.0
        %945 = vmatprep.mubr.f32.mxu0 0.0
        %946 = vmatmul.mubr.f32.gmra.mrb[0].mxu0 %v877
        %v947 = vpop.f32.mrb[0].mxu0
        %v948 = vadd.f32 0.0, %v947
        %v949 = vpop.f32.mrb[0].mxu0
        %v950 = vadd.f32 0.0, %v949
        %951 = vdwg.mxu0
        %v952 = vadd.f32 %v878, %v948
        %v953 = vxor.u32 %v952, 2147483648
        %v954 = vmul.f32 %v953, 1.442695
        %v955 = vpow.pop %v954
        %v956 = vadd.f32 %v955, 1.0
        %v957 = vrcp.pop %v956
        %v958 = vmul.f32 1.0, %v957
        %v959 = vadd.f32 %v879, %v950
        %v960 = vxor.u32 %v959, 2147483648
        %v961 = vmul.f32 %v960, 1.442695
        %v962 = vpow.pop %v961
        %v963 = vadd.f32 %v962, 1.0
        %v964 = vrcp.pop %v963
        %v965 = vmul.f32 1.0, %v964
        %966 = vmatprep.subr.mxu0 0.0
        %967 = vmatpush1.msra.mxu0 %v647
        %968 = vmatprep.subr.mxu0 0.0
        %969 = vmatpush1.msra.mxu0 %v650
        %970 = vmatprep.subr.mxu0 0.0
        %971 = vmatpush1.msra.mxu0 %v653
        %972 = vmatprep.subr.mxu0 0.0
        %973 = vmatpush1.msra.mxu0 %v656
        %974 = vmatprep.subr.mxu0 0.0
        %975 = vmatpush1.msra.mxu0 %v659
        %976 = vmatprep.subr.mxu0 0.0
        %977 = vmatpush1.msra.mxu0 %v662
        %978 = vmatprep.subr.mxu0 0.0
        %979 = vmatpush1.msra.mxu0 %v665
        %980 = vmatprep.subr.mxu0 0.0
        %981 = vmatpush1.msra.mxu0 %v668
        %982 = vmatprep.subr.mxu0 0.0
        %983 = vmatpush1.msra.mxu0 %v671
        %984 = vmatprep.subr.mxu0 0.0
        %985 = vmatpush1.msra.mxu0 %v674
        %986 = vmatprep.subr.mxu0 0.0
        %987 = vmatpush1.msra.mxu0 %v677
        %988 = vmatprep.subr.mxu0 0.0
        %989 = vmatpush1.msra.mxu0 %v680
        %990 = vmatprep.subr.mxu0 0.0
        %991 = vmatpush1.msra.mxu0 %v683
        %992 = vmatprep.subr.mxu0 0.0
        %993 = vmatpush1.msra.mxu0 %v686
        %994 = vmatprep.subr.mxu0 0.0
        %995 = vmatpush1.msra.mxu0 %v689
        %996 = vmatprep.subr.mxu0 0.0
        %997 = vmatpush1.msra.mxu0 %v692
        %998 = vmatprep.subr.mxu0 0.0
        %999 = vmatpush1.msra.mxu0 0.0
        %1000 = vmatprep.subr.mxu0 0.0
        %1001 = vmatpush1.msra.mxu0 0.0
        %1002 = vmatprep.subr.mxu0 0.0
        %1003 = vmatpush1.msra.mxu0 0.0
        %1004 = vmatprep.subr.mxu0 0.0
        %1005 = vmatpush1.msra.mxu0 0.0
        %1006 = vmatprep.subr.mxu0 0.0
        %1007 = vmatpush1.msra.mxu0 0.0
        %1008 = vmatprep.subr.mxu0 0.0
        %1009 = vmatpush1.msra.mxu0 0.0
        %1010 = vmatprep.subr.mxu0 0.0
        %1011 = vmatpush1.msra.mxu0 0.0
        %1012 = vmatprep.subr.mxu0 0.0
        %1013 = vmatpush1.msra.mxu0 0.0
        %1014 = vmatprep.subr.mxu0 0.0
        %1015 = vmatpush1.msra.mxu0 0.0
        %1016 = vmatprep.subr.mxu0 0.0
        %1017 = vmatpush1.msra.mxu0 0.0
        %1018 = vmatprep.subr.mxu0 0.0
        %1019 = vmatpush1.msra.mxu0 0.0
        %1020 = vmatprep.subr.mxu0 0.0
        %1021 = vmatpush1.msra.mxu0 0.0
        %1022 = vmatprep.subr.mxu0 0.0
        %1023 = vmatpush1.msra.mxu0 0.0
        %1024 = vmatprep.subr.mxu0 0.0
        %1025 = vmatpush1.msra.mxu0 0.0
        %1026 = vmatprep.subr.mxu0 0.0
        %1027 = vmatpush1.msra.mxu0 0.0
        %1028 = vmatprep.subr.mxu0 0.0
        %1029 = vmatpush1.msra.mxu0 0.0
        %1030 = vmatprep.mubr.f32.mxu0 0.0
        %1031 = vmatmul.mubr.f32.gmra.mrb[0].mxu0 %v877
        %v1032 = vpop.f32.mrb[0].mxu0
        %v1033 = vadd.f32 %v698, %v1032
        %v1034 = vpop.f32.mrb[0].mxu0
        %1035 = vdwg.mxu0
        %v1036 = vmul.f32 %v958, %v1033
        %v1037 = vadd.f32 %v880, %v1036
        %v1038 = vtanh.pop %v1037
        %v1039 = vsub.f32 %v877, %v1038
        %v1040 = vmul.f32 %v965, %v1039
        %v1041 = vadd.f32 %v1038, %v1040
        %1042 = vst [vmem:[#allocation2] sm:$0xff] %v1041
        %s1043 = scalar_lea.vmem %s335, 8
        %1044 = vst [vmem:[%s1043] sm:$0xff] %v1041
      $region56: #{encoder_rnn_forward.1} parent=43 // pred_fallthru
        _
      %s1045 = sadd.s32 %s700, 2
      %p1046 = scmp.lt.s32.totalorder %s1045, 10
      // Predicated region
      $region57: #{encoder_rnn_forward.1} parent=43 // pred_check
        %p1047 = pneg %p1046
      $region58: #{encoder_rnn_forward.1} parent=43 // pred_check_branch
        %1049 = sbr.rel (%p1047) target = $region60
      $region59: #{encoder_rnn_forward.1} parent=43 // pred_region
        %v1050 = vld [vmem:[#allocation2] sm:$0xff]
        %v1051 = vld [vmem:[#allocation3 + $0x30] sm:$0xff]
        %v1052 = vld [vmem:[#allocation3 + $0x38] sm:$0xff]
        %v1053 = vld [vmem:[#allocation3 + $0x40] sm:$0xff]
        %1054 = vmatprep.subr.mxu0 %v646
        %1055 = vmatpush1.msra.mxu0 %v645
        %1056 = vmatprep.subr.mxu0 %v649
        %1057 = vmatpush1.msra.mxu0 %v648
        %1058 = vmatprep.subr.mxu0 %v652
        %1059 = vmatpush1.msra.mxu0 %v651
        %1060 = vmatprep.subr.mxu0 %v655
        %1061 = vmatpush1.msra.mxu0 %v654
        %1062 = vmatprep.subr.mxu0 %v658
        %1063 = vmatpush1.msra.mxu0 %v657
        %1064 = vmatprep.subr.mxu0 %v661
        %1065 = vmatpush1.msra.mxu0 %v660
        %1066 = vmatprep.subr.mxu0 %v664
        %1067 = vmatpush1.msra.mxu0 %v663
        %1068 = vmatprep.subr.mxu0 %v667
        %1069 = vmatpush1.msra.mxu0 %v666
        %1070 = vmatprep.subr.mxu0 %v670
        %1071 = vmatpush1.msra.mxu0 %v669
        %1072 = vmatprep.subr.mxu0 %v673
        %1073 = vmatpush1.msra.mxu0 %v672
        %1074 = vmatprep.subr.mxu0 %v676
        %1075 = vmatpush1.msra.mxu0 %v675
        %1076 = vmatprep.subr.mxu0 %v679
        %1077 = vmatpush1.msra.mxu0 %v678
        %1078 = vmatprep.subr.mxu0 %v682
        %1079 = vmatpush1.msra.mxu0 %v681
        %1080 = vmatprep.subr.mxu0 %v685
        %1081 = vmatpush1.msra.mxu0 %v684
        %1082 = vmatprep.subr.mxu0 %v688
        %1083 = vmatpush1.msra.mxu0 %v687
        %1084 = vmatprep.subr.mxu0 %v691
        %1085 = vmatpush1.msra.mxu0 %v690
        %1086 = vmatprep.subr.mxu0 0.0
        %1087 = vmatpush1.msra.mxu0 0.0
        %1088 = vmatprep.subr.mxu0 0.0
        %1089 = vmatpush1.msra.mxu0 0.0
        %1090 = vmatprep.subr.mxu0 0.0
        %1091 = vmatpush1.msra.mxu0 0.0
        %1092 = vmatprep.subr.mxu0 0.0
        %1093 = vmatpush1.msra.mxu0 0.0
        %1094 = vmatprep.subr.mxu0 0.0
        %1095 = vmatpush1.msra.mxu0 0.0
        %1096 = vmatprep.subr.mxu0 0.0
        %1097 = vmatpush1.msra.mxu0 0.0
        %1098 = vmatprep.subr.mxu0 0.0
        %1099 = vmatpush1.msra.mxu0 0.0
        %1100 = vmatprep.subr.mxu0 0.0
        %1101 = vmatpush1.msra.mxu0 0.0
        %1102 = vmatprep.subr.mxu0 0.0
        %1103 = vmatpush1.msra.mxu0 0.0
        %1104 = vmatprep.subr.mxu0 0.0
        %1105 = vmatpush1.msra.mxu0 0.0
        %1106 = vmatprep.subr.mxu0 0.0
        %1107 = vmatpush1.msra.mxu0 0.0
        %1108 = vmatprep.subr.mxu0 0.0
        %1109 = vmatpush1.msra.mxu0 0.0
        %1110 = vmatprep.subr.mxu0 0.0
        %1111 = vmatpush1.msra.mxu0 0.0
        %1112 = vmatprep.subr.mxu0 0.0
        %1113 = vmatpush1.msra.mxu0 0.0
        %1114 = vmatprep.subr.mxu0 0.0
        %1115 = vmatpush1.msra.mxu0 0.0
        %1116 = vmatprep.subr.mxu0 0.0
        %1117 = vmatpush1.msra.mxu0 0.0
        %1118 = vmatprep.mubr.f32.mxu0 0.0
        %1119 = vmatmul.mubr.f32.gmra.mrb[0].mxu0 %v1050
        %v1120 = vpop.f32.mrb[0].mxu0
        %v1121 = vadd.f32 0.0, %v1120
        %v1122 = vpop.f32.mrb[0].mxu0
        %v1123 = vadd.f32 0.0, %v1122
        %1124 = vdwg.mxu0
        %v1125 = vadd.f32 %v1051, %v1121
        %v1126 = vxor.u32 %v1125, 2147483648
        %v1127 = vmul.f32 %v1126, 1.442695
        %v1128 = vpow.pop %v1127
        %v1129 = vadd.f32 %v1128, 1.0
        %v1130 = vrcp.pop %v1129
        %v1131 = vmul.f32 1.0, %v1130
        %v1132 = vadd.f32 %v1052, %v1123
        %v1133 = vxor.u32 %v1132, 2147483648
        %v1134 = vmul.f32 %v1133, 1.442695
        %v1135 = vpow.pop %v1134
        %v1136 = vadd.f32 %v1135, 1.0
        %v1137 = vrcp.pop %v1136
        %v1138 = vmul.f32 1.0, %v1137
        %1139 = vmatprep.subr.mxu0 0.0
        %1140 = vmatpush1.msra.mxu0 %v647
        %1141 = vmatprep.subr.mxu0 0.0
        %1142 = vmatpush1.msra.mxu0 %v650
        %1143 = vmatprep.subr.mxu0 0.0
        %1144 = vmatpush1.msra.mxu0 %v653
        %1145 = vmatprep.subr.mxu0 0.0
        %1146 = vmatpush1.msra.mxu0 %v656
        %1147 = vmatprep.subr.mxu0 0.0
        %1148 = vmatpush1.msra.mxu0 %v659
        %1149 = vmatprep.subr.mxu0 0.0
        %1150 = vmatpush1.msra.mxu0 %v662
        %1151 = vmatprep.subr.mxu0 0.0
        %1152 = vmatpush1.msra.mxu0 %v665
        %1153 = vmatprep.subr.mxu0 0.0
        %1154 = vmatpush1.msra.mxu0 %v668
        %1155 = vmatprep.subr.mxu0 0.0
        %1156 = vmatpush1.msra.mxu0 %v671
        %1157 = vmatprep.subr.mxu0 0.0
        %1158 = vmatpush1.msra.mxu0 %v674
        %1159 = vmatprep.subr.mxu0 0.0
        %1160 = vmatpush1.msra.mxu0 %v677
        %1161 = vmatprep.subr.mxu0 0.0
        %1162 = vmatpush1.msra.mxu0 %v680
        %1163 = vmatprep.subr.mxu0 0.0
        %1164 = vmatpush1.msra.mxu0 %v683
        %1165 = vmatprep.subr.mxu0 0.0
        %1166 = vmatpush1.msra.mxu0 %v686
        %1167 = vmatprep.subr.mxu0 0.0
        %1168 = vmatpush1.msra.mxu0 %v689
        %1169 = vmatprep.subr.mxu0 0.0
        %1170 = vmatpush1.msra.mxu0 %v692
        %1171 = vmatprep.subr.mxu0 0.0
        %1172 = vmatpush1.msra.mxu0 0.0
        %1173 = vmatprep.subr.mxu0 0.0
        %1174 = vmatpush1.msra.mxu0 0.0
        %1175 = vmatprep.subr.mxu0 0.0
        %1176 = vmatpush1.msra.mxu0 0.0
        %1177 = vmatprep.subr.mxu0 0.0
        %1178 = vmatpush1.msra.mxu0 0.0
        %1179 = vmatprep.subr.mxu0 0.0
        %1180 = vmatpush1.msra.mxu0 0.0
        %1181 = vmatprep.subr.mxu0 0.0
        %1182 = vmatpush1.msra.mxu0 0.0
        %1183 = vmatprep.subr.mxu0 0.0
        %1184 = vmatpush1.msra.mxu0 0.0
        %1185 = vmatprep.subr.mxu0 0.0
        %1186 = vmatpush1.msra.mxu0 0.0
        %1187 = vmatprep.subr.mxu0 0.0
        %1188 = vmatpush1.msra.mxu0 0.0
        %1189 = vmatprep.subr.mxu0 0.0
        %1190 = vmatpush1.msra.mxu0 0.0
        %1191 = vmatprep.subr.mxu0 0.0
        %1192 = vmatpush1.msra.mxu0 0.0
        %1193 = vmatprep.subr.mxu0 0.0
        %1194 = vmatpush1.msra.mxu0 0.0
        %1195 = vmatprep.subr.mxu0 0.0
        %1196 = vmatpush1.msra.mxu0 0.0
        %1197 = vmatprep.subr.mxu0 0.0
        %1198 = vmatpush1.msra.mxu0 0.0
        %1199 = vmatprep.subr.mxu0 0.0
        %1200 = vmatpush1.msra.mxu0 0.0
        %1201 = vmatprep.subr.mxu0 0.0
        %1202 = vmatpush1.msra.mxu0 0.0
        %1203 = vmatprep.mubr.f32.mxu0 0.0
        %1204 = vmatmul.mubr.f32.gmra.mrb[0].mxu0 %v1050
        %v1205 = vpop.f32.mrb[0].mxu0
        %v1206 = vadd.f32 %v698, %v1205
        %v1207 = vpop.f32.mrb[0].mxu0
        %1208 = vdwg.mxu0
        %v1209 = vmul.f32 %v1131, %v1206
        %v1210 = vadd.f32 %v1053, %v1209
        %v1211 = vtanh.pop %v1210
        %v1212 = vsub.f32 %v1050, %v1211
        %v1213 = vmul.f32 %v1138, %v1212
        %v1214 = vadd.f32 %v1211, %v1213
        %1215 = vst [vmem:[#allocation2] sm:$0xff] %v1214
        %s1216 = scalar_lea.vmem %s335, 16
        %1217 = vst [vmem:[%s1216] sm:$0xff] %v1214
      $region60: #{encoder_rnn_forward.1} parent=43 // pred_fallthru
        _
      %s1218 = sadd.s32 %s700, 3
      %p1219 = scmp.lt.s32.totalorder %s1218, 10
      // Predicated region
      $region61: #{encoder_rnn_forward.1} parent=43 // pred_check
        %p1220 = pneg %p1219
      $region62: #{encoder_rnn_forward.1} parent=43 // pred_check_branch
        %1222 = sbr.rel (%p1220) target = $region64
      $region63: #{encoder_rnn_forward.1} parent=43 // pred_region
        %v1223 = vld [vmem:[#allocation2] sm:$0xff]
        %v1224 = vld [vmem:[#allocation3 + $0x48] sm:$0xff]
        %v1225 = vld [vmem:[#allocation3 + $0x50] sm:$0xff]
        %v1226 = vld [vmem:[#allocation3 + $0x58] sm:$0xff]
        %1227 = vmatprep.subr.mxu0 %v646
        %1228 = vmatpush1.msra.mxu0 %v645
        %1229 = vmatprep.subr.mxu0 %v649
        %1230 = vmatpush1.msra.mxu0 %v648
        %1231 = vmatprep.subr.mxu0 %v652
        %1232 = vmatpush1.msra.mxu0 %v651
        %1233 = vmatprep.subr.mxu0 %v655
        %1234 = vmatpush1.msra.mxu0 %v654
        %1235 = vmatprep.subr.mxu0 %v658
        %1236 = vmatpush1.msra.mxu0 %v657
        %1237 = vmatprep.subr.mxu0 %v661
        %1238 = vmatpush1.msra.mxu0 %v660
        %1239 = vmatprep.subr.mxu0 %v664
        %1240 = vmatpush1.msra.mxu0 %v663
        %1241 = vmatprep.subr.mxu0 %v667
        %1242 = vmatpush1.msra.mxu0 %v666
        %1243 = vmatprep.subr.mxu0 %v670
        %1244 = vmatpush1.msra.mxu0 %v669
        %1245 = vmatprep.subr.mxu0 %v673
        %1246 = vmatpush1.msra.mxu0 %v672
        %1247 = vmatprep.subr.mxu0 %v676
        %1248 = vmatpush1.msra.mxu0 %v675
        %1249 = vmatprep.subr.mxu0 %v679
        %1250 = vmatpush1.msra.mxu0 %v678
        %1251 = vmatprep.subr.mxu0 %v682
        %1252 = vmatpush1.msra.mxu0 %v681
        %1253 = vmatprep.subr.mxu0 %v685
        %1254 = vmatpush1.msra.mxu0 %v684
        %1255 = vmatprep.subr.mxu0 %v688
        %1256 = vmatpush1.msra.mxu0 %v687
        %1257 = vmatprep.subr.mxu0 %v691
        %1258 = vmatpush1.msra.mxu0 %v690
        %1259 = vmatprep.subr.mxu0 0.0
        %1260 = vmatpush1.msra.mxu0 0.0
        %1261 = vmatprep.subr.mxu0 0.0
        %1262 = vmatpush1.msra.mxu0 0.0
        %1263 = vmatprep.subr.mxu0 0.0
        %1264 = vmatpush1.msra.mxu0 0.0
        %1265 = vmatprep.subr.mxu0 0.0
        %1266 = vmatpush1.msra.mxu0 0.0
        %1267 = vmatprep.subr.mxu0 0.0
        %1268 = vmatpush1.msra.mxu0 0.0
        %1269 = vmatprep.subr.mxu0 0.0
        %1270 = vmatpush1.msra.mxu0 0.0
        %1271 = vmatprep.subr.mxu0 0.0
        %1272 = vmatpush1.msra.mxu0 0.0
        %1273 = vmatprep.subr.mxu0 0.0
        %1274 = vmatpush1.msra.mxu0 0.0
        %1275 = vmatprep.subr.mxu0 0.0
        %1276 = vmatpush1.msra.mxu0 0.0
        %1277 = vmatprep.subr.mxu0 0.0
        %1278 = vmatpush1.msra.mxu0 0.0
        %1279 = vmatprep.subr.mxu0 0.0
        %1280 = vmatpush1.msra.mxu0 0.0
        %1281 = vmatprep.subr.mxu0 0.0
        %1282 = vmatpush1.msra.mxu0 0.0
        %1283 = vmatprep.subr.mxu0 0.0
        %1284 = vmatpush1.msra.mxu0 0.0
        %1285 = vmatprep.subr.mxu0 0.0
        %1286 = vmatpush1.msra.mxu0 0.0
        %1287 = vmatprep.subr.mxu0 0.0
        %1288 = vmatpush1.msra.mxu0 0.0
        %1289 = vmatprep.subr.mxu0 0.0
        %1290 = vmatpush1.msra.mxu0 0.0
        %1291 = vmatprep.mubr.f32.mxu0 0.0
        %1292 = vmatmul.mubr.f32.gmra.mrb[0].mxu0 %v1223
        %v1293 = vpop.f32.mrb[0].mxu0
        %v1294 = vadd.f32 0.0, %v1293
        %v1295 = vpop.f32.mrb[0].mxu0
        %v1296 = vadd.f32 0.0, %v1295
        %1297 = vdwg.mxu0
        %v1298 = vadd.f32 %v1224, %v1294
        %v1299 = vxor.u32 %v1298, 2147483648
        %v1300 = vmul.f32 %v1299, 1.442695
        %v1301 = vpow.pop %v1300
        %v1302 = vadd.f32 %v1301, 1.0
        %v1303 = vrcp.pop %v1302
        %v1304 = vmul.f32 1.0, %v1303
        %v1305 = vadd.f32 %v1225, %v1296
        %v1306 = vxor.u32 %v1305, 2147483648
        %v1307 = vmul.f32 %v1306, 1.442695
        %v1308 = vpow.pop %v1307
        %v1309 = vadd.f32 %v1308, 1.0
        %v1310 = vrcp.pop %v1309
        %v1311 = vmul.f32 1.0, %v1310
        %1312 = vmatprep.subr.mxu0 0.0
        %1313 = vmatpush1.msra.mxu0 %v647
        %1314 = vmatprep.subr.mxu0 0.0
        %1315 = vmatpush1.msra.mxu0 %v650
        %1316 = vmatprep.subr.mxu0 0.0
        %1317 = vmatpush1.msra.mxu0 %v653
        %1318 = vmatprep.subr.mxu0 0.0
        %1319 = vmatpush1.msra.mxu0 %v656
        %1320 = vmatprep.subr.mxu0 0.0
        %1321 = vmatpush1.msra.mxu0 %v659
        %1322 = vmatprep.subr.mxu0 0.0
        %1323 = vmatpush1.msra.mxu0 %v662
        %1324 = vmatprep.subr.mxu0 0.0
        %1325 = vmatpush1.msra.mxu0 %v665
        %1326 = vmatprep.subr.mxu0 0.0
        %1327 = vmatpush1.msra.mxu0 %v668
        %1328 = vmatprep.subr.mxu0 0.0
        %1329 = vmatpush1.msra.mxu0 %v671
        %1330 = vmatprep.subr.mxu0 0.0
        %1331 = vmatpush1.msra.mxu0 %v674
        %1332 = vmatprep.subr.mxu0 0.0
        %1333 = vmatpush1.msra.mxu0 %v677
        %1334 = vmatprep.subr.mxu0 0.0
        %1335 = vmatpush1.msra.mxu0 %v680
        %1336 = vmatprep.subr.mxu0 0.0
        %1337 = vmatpush1.msra.mxu0 %v683
        %1338 = vmatprep.subr.mxu0 0.0
        %1339 = vmatpush1.msra.mxu0 %v686
        %1340 = vmatprep.subr.mxu0 0.0
        %1341 = vmatpush1.msra.mxu0 %v689
        %1342 = vmatprep.subr.mxu0 0.0
        %1343 = vmatpush1.msra.mxu0 %v692
        %1344 = vmatprep.subr.mxu0 0.0
        %1345 = vmatpush1.msra.mxu0 0.0
        %1346 = vmatprep.subr.mxu0 0.0
        %1347 = vmatpush1.msra.mxu0 0.0
        %1348 = vmatprep.subr.mxu0 0.0
        %1349 = vmatpush1.msra.mxu0 0.0
        %1350 = vmatprep.subr.mxu0 0.0
        %1351 = vmatpush1.msra.mxu0 0.0
        %1352 = vmatprep.subr.mxu0 0.0
        %1353 = vmatpush1.msra.mxu0 0.0
        %1354 = vmatprep.subr.mxu0 0.0
        %1355 = vmatpush1.msra.mxu0 0.0
        %1356 = vmatprep.subr.mxu0 0.0
        %1357 = vmatpush1.msra.mxu0 0.0
        %1358 = vmatprep.subr.mxu0 0.0
        %1359 = vmatpush1.msra.mxu0 0.0
        %1360 = vmatprep.subr.mxu0 0.0
        %1361 = vmatpush1.msra.mxu0 0.0
        %1362 = vmatprep.subr.mxu0 0.0
        %1363 = vmatpush1.msra.mxu0 0.0
        %1364 = vmatprep.subr.mxu0 0.0
        %1365 = vmatpush1.msra.mxu0 0.0
        %1366 = vmatprep.subr.mxu0 0.0
        %1367 = vmatpush1.msra.mxu0 0.0
        %1368 = vmatprep.subr.mxu0 0.0
        %1369 = vmatpush1.msra.mxu0 0.0
        %1370 = vmatprep.subr.mxu0 0.0
        %1371 = vmatpush1.msra.mxu0 0.0
        %1372 = vmatprep.subr.mxu0 0.0
        %1373 = vmatpush1.msra.mxu0 0.0
        %1374 = vmatprep.subr.mxu0 0.0
        %1375 = vmatpush1.msra.mxu0 0.0
        %1376 = vmatprep.mubr.f32.mxu0 0.0
        %1377 = vmatmul.mubr.f32.gmra.mrb[0].mxu0 %v1223
        %v1378 = vpop.f32.mrb[0].mxu0
        %v1379 = vadd.f32 %v698, %v1378
        %v1380 = vpop.f32.mrb[0].mxu0
        %1381 = vdwg.mxu0
        %v1382 = vmul.f32 %v1304, %v1379
        %v1383 = vadd.f32 %v1226, %v1382
        %v1384 = vtanh.pop %v1383
        %v1385 = vsub.f32 %v1223, %v1384
        %v1386 = vmul.f32 %v1311, %v1385
        %v1387 = vadd.f32 %v1384, %v1386
        %1388 = vst [vmem:[#allocation2] sm:$0xff] %v1387
        %s1389 = scalar_lea.vmem %s335, 24
        %1390 = vst [vmem:[%s1389] sm:$0xff] %v1387
      $region64: #{encoder_rnn_forward.1} parent=43 // pred_fallthru
        _
      %s1391 = sadd.s32 %s700, 4
      %p1392 = scmp.lt.s32.totalorder %s1391, 10
      // Predicated region
      $region65: #{encoder_rnn_forward.1} parent=43 // pred_check
        %p1393 = pneg %p1392
      $region66: #{encoder_rnn_forward.1} parent=43 // pred_check_branch
        %1395 = sbr.rel (%p1393) target = $region68
      $region67: #{encoder_rnn_forward.1} parent=43 // pred_region
        %v1396 = vld [vmem:[#allocation2] sm:$0xff]
        %v1397 = vld [vmem:[#allocation3 + $0x60] sm:$0xff]
        %v1398 = vld [vmem:[#allocation3 + $0x68] sm:$0xff]
        %v1399 = vld [vmem:[#allocation3 + $0x70] sm:$0xff]
        %1400 = vmatprep.subr.mxu0 %v646
        %1401 = vmatpush1.msra.mxu0 %v645
        %1402 = vmatprep.subr.mxu0 %v649
        %1403 = vmatpush1.msra.mxu0 %v648
        %1404 = vmatprep.subr.mxu0 %v652
        %1405 = vmatpush1.msra.mxu0 %v651
        %1406 = vmatprep.subr.mxu0 %v655
        %1407 = vmatpush1.msra.mxu0 %v654
        %1408 = vmatprep.subr.mxu0 %v658
        %1409 = vmatpush1.msra.mxu0 %v657
        %1410 = vmatprep.subr.mxu0 %v661
        %1411 = vmatpush1.msra.mxu0 %v660
        %1412 = vmatprep.subr.mxu0 %v664
        %1413 = vmatpush1.msra.mxu0 %v663
        %1414 = vmatprep.subr.mxu0 %v667
        %1415 = vmatpush1.msra.mxu0 %v666
        %1416 = vmatprep.subr.mxu0 %v670
        %1417 = vmatpush1.msra.mxu0 %v669
        %1418 = vmatprep.subr.mxu0 %v673
        %1419 = vmatpush1.msra.mxu0 %v672
        %1420 = vmatprep.subr.mxu0 %v676
        %1421 = vmatpush1.msra.mxu0 %v675
        %1422 = vmatprep.subr.mxu0 %v679
        %1423 = vmatpush1.msra.mxu0 %v678
        %1424 = vmatprep.subr.mxu0 %v682
        %1425 = vmatpush1.msra.mxu0 %v681
        %1426 = vmatprep.subr.mxu0 %v685
        %1427 = vmatpush1.msra.mxu0 %v684
        %1428 = vmatprep.subr.mxu0 %v688
        %1429 = vmatpush1.msra.mxu0 %v687
        %1430 = vmatprep.subr.mxu0 %v691
        %1431 = vmatpush1.msra.mxu0 %v690
        %1432 = vmatprep.subr.mxu0 0.0
        %1433 = vmatpush1.msra.mxu0 0.0
        %1434 = vmatprep.subr.mxu0 0.0
        %1435 = vmatpush1.msra.mxu0 0.0
        %1436 = vmatprep.subr.mxu0 0.0
        %1437 = vmatpush1.msra.mxu0 0.0
        %1438 = vmatprep.subr.mxu0 0.0
        %1439 = vmatpush1.msra.mxu0 0.0
        %1440 = vmatprep.subr.mxu0 0.0
        %1441 = vmatpush1.msra.mxu0 0.0
        %1442 = vmatprep.subr.mxu0 0.0
        %1443 = vmatpush1.msra.mxu0 0.0
        %1444 = vmatprep.subr.mxu0 0.0
        %1445 = vmatpush1.msra.mxu0 0.0
        %1446 = vmatprep.subr.mxu0 0.0
        %1447 = vmatpush1.msra.mxu0 0.0
        %1448 = vmatprep.subr.mxu0 0.0
        %1449 = vmatpush1.msra.mxu0 0.0
        %1450 = vmatprep.subr.mxu0 0.0
        %1451 = vmatpush1.msra.mxu0 0.0
        %1452 = vmatprep.subr.mxu0 0.0
        %1453 = vmatpush1.msra.mxu0 0.0
        %1454 = vmatprep.subr.mxu0 0.0
        %1455 = vmatpush1.msra.mxu0 0.0
        %1456 = vmatprep.subr.mxu0 0.0
        %1457 = vmatpush1.msra.mxu0 0.0
        %1458 = vmatprep.subr.mxu0 0.0
        %1459 = vmatpush1.msra.mxu0 0.0
        %1460 = vmatprep.subr.mxu0 0.0
        %1461 = vmatpush1.msra.mxu0 0.0
        %1462 = vmatprep.subr.mxu0 0.0
        %1463 = vmatpush1.msra.mxu0 0.0
        %1464 = vmatprep.mubr.f32.mxu0 0.0
        %1465 = vmatmul.mubr.f32.gmra.mrb[0].mxu0 %v1396
        %v1466 = vpop.f32.mrb[0].mxu0
        %v1467 = vadd.f32 0.0, %v1466
        %v1468 = vpop.f32.mrb[0].mxu0
        %v1469 = vadd.f32 0.0, %v1468
        %1470 = vdwg.mxu0
        %v1471 = vadd.f32 %v1397, %v1467
        %v1472 = vxor.u32 %v1471, 2147483648
        %v1473 = vmul.f32 %v1472, 1.442695
        %v1474 = vpow.pop %v1473
        %v1475 = vadd.f32 %v1474, 1.0
        %v1476 = vrcp.pop %v1475
        %v1477 = vmul.f32 1.0, %v1476
        %v1478 = vadd.f32 %v1398, %v1469
        %v1479 = vxor.u32 %v1478, 2147483648
        %v1480 = vmul.f32 %v1479, 1.442695
        %v1481 = vpow.pop %v1480
        %v1482 = vadd.f32 %v1481, 1.0
        %v1483 = vrcp.pop %v1482
        %v1484 = vmul.f32 1.0, %v1483
        %1485 = vmatprep.subr.mxu0 0.0
        %1486 = vmatpush1.msra.mxu0 %v647
        %1487 = vmatprep.subr.mxu0 0.0
        %1488 = vmatpush1.msra.mxu0 %v650
        %1489 = vmatprep.subr.mxu0 0.0
        %1490 = vmatpush1.msra.mxu0 %v653
        %1491 = vmatprep.subr.mxu0 0.0
        %1492 = vmatpush1.msra.mxu0 %v656
        %1493 = vmatprep.subr.mxu0 0.0
        %1494 = vmatpush1.msra.mxu0 %v659
        %1495 = vmatprep.subr.mxu0 0.0
        %1496 = vmatpush1.msra.mxu0 %v662
        %1497 = vmatprep.subr.mxu0 0.0
        %1498 = vmatpush1.msra.mxu0 %v665
        %1499 = vmatprep.subr.mxu0 0.0
        %1500 = vmatpush1.msra.mxu0 %v668
        %1501 = vmatprep.subr.mxu0 0.0
        %1502 = vmatpush1.msra.mxu0 %v671
        %1503 = vmatprep.subr.mxu0 0.0
        %1504 = vmatpush1.msra.mxu0 %v674
        %1505 = vmatprep.subr.mxu0 0.0
        %1506 = vmatpush1.msra.mxu0 %v677
        %1507 = vmatprep.subr.mxu0 0.0
        %1508 = vmatpush1.msra.mxu0 %v680
        %1509 = vmatprep.subr.mxu0 0.0
        %1510 = vmatpush1.msra.mxu0 %v683
        %1511 = vmatprep.subr.mxu0 0.0
        %1512 = vmatpush1.msra.mxu0 %v686
        %1513 = vmatprep.subr.mxu0 0.0
        %1514 = vmatpush1.msra.mxu0 %v689
        %1515 = vmatprep.subr.mxu0 0.0
        %1516 = vmatpush1.msra.mxu0 %v692
        %1517 = vmatprep.subr.mxu0 0.0
        %1518 = vmatpush1.msra.mxu0 0.0
        %1519 = vmatprep.subr.mxu0 0.0
        %1520 = vmatpush1.msra.mxu0 0.0
        %1521 = vmatprep.subr.mxu0 0.0
        %1522 = vmatpush1.msra.mxu0 0.0
        %1523 = vmatprep.subr.mxu0 0.0
        %1524 = vmatpush1.msra.mxu0 0.0
        %1525 = vmatprep.subr.mxu0 0.0
        %1526 = vmatpush1.msra.mxu0 0.0
        %1527 = vmatprep.subr.mxu0 0.0
        %1528 = vmatpush1.msra.mxu0 0.0
        %1529 = vmatprep.subr.mxu0 0.0
        %1530 = vmatpush1.msra.mxu0 0.0
        %1531 = vmatprep.subr.mxu0 0.0
        %1532 = vmatpush1.msra.mxu0 0.0
        %1533 = vmatprep.subr.mxu0 0.0
        %1534 = vmatpush1.msra.mxu0 0.0
        %1535 = vmatprep.subr.mxu0 0.0
        %1536 = vmatpush1.msra.mxu0 0.0
        %1537 = vmatprep.subr.mxu0 0.0
        %1538 = vmatpush1.msra.mxu0 0.0
        %1539 = vmatprep.subr.mxu0 0.0
        %1540 = vmatpush1.msra.mxu0 0.0
        %1541 = vmatprep.subr.mxu0 0.0
        %1542 = vmatpush1.msra.mxu0 0.0
        %1543 = vmatprep.subr.mxu0 0.0
        %1544 = vmatpush1.msra.mxu0 0.0
        %1545 = vmatprep.subr.mxu0 0.0
        %1546 = vmatpush1.msra.mxu0 0.0
        %1547 = vmatprep.subr.mxu0 0.0
        %1548 = vmatpush1.msra.mxu0 0.0
        %1549 = vmatprep.mubr.f32.mxu0 0.0
        %1550 = vmatmul.mubr.f32.gmra.mrb[0].mxu0 %v1396
        %v1551 = vpop.f32.mrb[0].mxu0
        %v1552 = vadd.f32 %v698, %v1551
        %v1553 = vpop.f32.mrb[0].mxu0
        %1554 = vdwg.mxu0
        %v1555 = vmul.f32 %v1477, %v1552
        %v1556 = vadd.f32 %v1399, %v1555
        %v1557 = vtanh.pop %v1556
        %v1558 = vsub.f32 %v1396, %v1557
        %v1559 = vmul.f32 %v1484, %v1558
        %v1560 = vadd.f32 %v1557, %v1559
        %1561 = vst [vmem:[#allocation2] sm:$0xff] %v1560
        %s1562 = scalar_lea.vmem %s335, 32
        %1563 = vst [vmem:[%s1562] sm:$0xff] %v1560
      $region68: #{encoder_rnn_forward.1} parent=43 // pred_fallthru
        _
      %s1564 = sadd.s32 %s700, 5
      %p1565 = scmp.lt.s32.totalorder %s1564, 10
      // Predicated region
      $region69: #{encoder_rnn_forward.1} parent=43 // pred_check
        %p1566 = pneg %p1565
      $region70: #{encoder_rnn_forward.1} parent=43 // pred_check_branch
        %1568 = sbr.rel (%p1566) target = $region72
      $region71: #{encoder_rnn_forward.1} parent=43 // pred_region
        %v1569 = vld [vmem:[#allocation2] sm:$0xff]
        %v1570 = vld [vmem:[#allocation3 + $0x78] sm:$0xff]
        %v1571 = vld [vmem:[#allocation3 + $0x80] sm:$0xff]
        %v1572 = vld [vmem:[#allocation3 + $0x88] sm:$0xff]
        %1573 = vmatprep.subr.mxu0 %v646
        %1574 = vmatpush1.msra.mxu0 %v645
        %1575 = vmatprep.subr.mxu0 %v649
        %1576 = vmatpush1.msra.mxu0 %v648
        %1577 = vmatprep.subr.mxu0 %v652
        %1578 = vmatpush1.msra.mxu0 %v651
        %1579 = vmatprep.subr.mxu0 %v655
        %1580 = vmatpush1.msra.mxu0 %v654
        %1581 = vmatprep.subr.mxu0 %v658
        %1582 = vmatpush1.msra.mxu0 %v657
        %1583 = vmatprep.subr.mxu0 %v661
        %1584 = vmatpush1.msra.mxu0 %v660
        %1585 = vmatprep.subr.mxu0 %v664
        %1586 = vmatpush1.msra.mxu0 %v663
        %1587 = vmatprep.subr.mxu0 %v667
        %1588 = vmatpush1.msra.mxu0 %v666
        %1589 = vmatprep.subr.mxu0 %v670
        %1590 = vmatpush1.msra.mxu0 %v669
        %1591 = vmatprep.subr.mxu0 %v673
        %1592 = vmatpush1.msra.mxu0 %v672
        %1593 = vmatprep.subr.mxu0 %v676
        %1594 = vmatpush1.msra.mxu0 %v675
        %1595 = vmatprep.subr.mxu0 %v679
        %1596 = vmatpush1.msra.mxu0 %v678
        %1597 = vmatprep.subr.mxu0 %v682
        %1598 = vmatpush1.msra.mxu0 %v681
        %1599 = vmatprep.subr.mxu0 %v685
        %1600 = vmatpush1.msra.mxu0 %v684
        %1601 = vmatprep.subr.mxu0 %v688
        %1602 = vmatpush1.msra.mxu0 %v687
        %1603 = vmatprep.subr.mxu0 %v691
        %1604 = vmatpush1.msra.mxu0 %v690
        %1605 = vmatprep.subr.mxu0 0.0
        %1606 = vmatpush1.msra.mxu0 0.0
        %1607 = vmatprep.subr.mxu0 0.0
        %1608 = vmatpush1.msra.mxu0 0.0
        %1609 = vmatprep.subr.mxu0 0.0
        %1610 = vmatpush1.msra.mxu0 0.0
        %1611 = vmatprep.subr.mxu0 0.0
        %1612 = vmatpush1.msra.mxu0 0.0
        %1613 = vmatprep.subr.mxu0 0.0
        %1614 = vmatpush1.msra.mxu0 0.0
        %1615 = vmatprep.subr.mxu0 0.0
        %1616 = vmatpush1.msra.mxu0 0.0
        %1617 = vmatprep.subr.mxu0 0.0
        %1618 = vmatpush1.msra.mxu0 0.0
        %1619 = vmatprep.subr.mxu0 0.0
        %1620 = vmatpush1.msra.mxu0 0.0
        %1621 = vmatprep.subr.mxu0 0.0
        %1622 = vmatpush1.msra.mxu0 0.0
        %1623 = vmatprep.subr.mxu0 0.0
        %1624 = vmatpush1.msra.mxu0 0.0
        %1625 = vmatprep.subr.mxu0 0.0
        %1626 = vmatpush1.msra.mxu0 0.0
        %1627 = vmatprep.subr.mxu0 0.0
        %1628 = vmatpush1.msra.mxu0 0.0
        %1629 = vmatprep.subr.mxu0 0.0
        %1630 = vmatpush1.msra.mxu0 0.0
        %1631 = vmatprep.subr.mxu0 0.0
        %1632 = vmatpush1.msra.mxu0 0.0
        %1633 = vmatprep.subr.mxu0 0.0
        %1634 = vmatpush1.msra.mxu0 0.0
        %1635 = vmatprep.subr.mxu0 0.0
        %1636 = vmatpush1.msra.mxu0 0.0
        %1637 = vmatprep.mubr.f32.mxu0 0.0
        %1638 = vmatmul.mubr.f32.gmra.mrb[0].mxu0 %v1569
        %v1639 = vpop.f32.mrb[0].mxu0
        %v1640 = vadd.f32 0.0, %v1639
        %v1641 = vpop.f32.mrb[0].mxu0
        %v1642 = vadd.f32 0.0, %v1641
        %1643 = vdwg.mxu0
        %v1644 = vadd.f32 %v1570, %v1640
        %v1645 = vxor.u32 %v1644, 2147483648
        %v1646 = vmul.f32 %v1645, 1.442695
        %v1647 = vpow.pop %v1646
        %v1648 = vadd.f32 %v1647, 1.0
        %v1649 = vrcp.pop %v1648
        %v1650 = vmul.f32 1.0, %v1649
        %v1651 = vadd.f32 %v1571, %v1642
        %v1652 = vxor.u32 %v1651, 2147483648
        %v1653 = vmul.f32 %v1652, 1.442695
        %v1654 = vpow.pop %v1653
        %v1655 = vadd.f32 %v1654, 1.0
        %v1656 = vrcp.pop %v1655
        %v1657 = vmul.f32 1.0, %v1656
        %1658 = vmatprep.subr.mxu0 0.0
        %1659 = vmatpush1.msra.mxu0 %v647
        %1660 = vmatprep.subr.mxu0 0.0
        %1661 = vmatpush1.msra.mxu0 %v650
        %1662 = vmatprep.subr.mxu0 0.0
        %1663 = vmatpush1.msra.mxu0 %v653
        %1664 = vmatprep.subr.mxu0 0.0
        %1665 = vmatpush1.msra.mxu0 %v656
        %1666 = vmatprep.subr.mxu0 0.0
        %1667 = vmatpush1.msra.mxu0 %v659
        %1668 = vmatprep.subr.mxu0 0.0
        %1669 = vmatpush1.msra.mxu0 %v662
        %1670 = vmatprep.subr.mxu0 0.0
        %1671 = vmatpush1.msra.mxu0 %v665
        %1672 = vmatprep.subr.mxu0 0.0
        %1673 = vmatpush1.msra.mxu0 %v668
        %1674 = vmatprep.subr.mxu0 0.0
        %1675 = vmatpush1.msra.mxu0 %v671
        %1676 = vmatprep.subr.mxu0 0.0
        %1677 = vmatpush1.msra.mxu0 %v674
        %1678 = vmatprep.subr.mxu0 0.0
        %1679 = vmatpush1.msra.mxu0 %v677
        %1680 = vmatprep.subr.mxu0 0.0
        %1681 = vmatpush1.msra.mxu0 %v680
        %1682 = vmatprep.subr.mxu0 0.0
        %1683 = vmatpush1.msra.mxu0 %v683
        %1684 = vmatprep.subr.mxu0 0.0
        %1685 = vmatpush1.msra.mxu0 %v686
        %1686 = vmatprep.subr.mxu0 0.0
        %1687 = vmatpush1.msra.mxu0 %v689
        %1688 = vmatprep.subr.mxu0 0.0
        %1689 = vmatpush1.msra.mxu0 %v692
        %1690 = vmatprep.subr.mxu0 0.0
        %1691 = vmatpush1.msra.mxu0 0.0
        %1692 = vmatprep.subr.mxu0 0.0
        %1693 = vmatpush1.msra.mxu0 0.0
        %1694 = vmatprep.subr.mxu0 0.0
        %1695 = vmatpush1.msra.mxu0 0.0
        %1696 = vmatprep.subr.mxu0 0.0
        %1697 = vmatpush1.msra.mxu0 0.0
        %1698 = vmatprep.subr.mxu0 0.0
        %1699 = vmatpush1.msra.mxu0 0.0
        %1700 = vmatprep.subr.mxu0 0.0
        %1701 = vmatpush1.msra.mxu0 0.0
        %1702 = vmatprep.subr.mxu0 0.0
        %1703 = vmatpush1.msra.mxu0 0.0
        %1704 = vmatprep.subr.mxu0 0.0
        %1705 = vmatpush1.msra.mxu0 0.0
        %1706 = vmatprep.subr.mxu0 0.0
        %1707 = vmatpush1.msra.mxu0 0.0
        %1708 = vmatprep.subr.mxu0 0.0
        %1709 = vmatpush1.msra.mxu0 0.0
        %1710 = vmatprep.subr.mxu0 0.0
        %1711 = vmatpush1.msra.mxu0 0.0
        %1712 = vmatprep.subr.mxu0 0.0
        %1713 = vmatpush1.msra.mxu0 0.0
        %1714 = vmatprep.subr.mxu0 0.0
        %1715 = vmatpush1.msra.mxu0 0.0
        %1716 = vmatprep.subr.mxu0 0.0
        %1717 = vmatpush1.msra.mxu0 0.0
        %1718 = vmatprep.subr.mxu0 0.0
        %1719 = vmatpush1.msra.mxu0 0.0
        %1720 = vmatprep.subr.mxu0 0.0
        %1721 = vmatpush1.msra.mxu0 0.0
        %1722 = vmatprep.mubr.f32.mxu0 0.0
        %1723 = vmatmul.mubr.f32.gmra.mrb[0].mxu0 %v1569
        %v1724 = vpop.f32.mrb[0].mxu0
        %v1725 = vadd.f32 %v698, %v1724
        %v1726 = vpop.f32.mrb[0].mxu0
        %1727 = vdwg.mxu0
        %v1728 = vmul.f32 %v1650, %v1725
        %v1729 = vadd.f32 %v1572, %v1728
        %v1730 = vtanh.pop %v1729
        %v1731 = vsub.f32 %v1569, %v1730
        %v1732 = vmul.f32 %v1657, %v1731
        %v1733 = vadd.f32 %v1730, %v1732
        %1734 = vst [vmem:[#allocation2] sm:$0xff] %v1733
        %s1735 = scalar_lea.vmem %s335, 40
        %1736 = vst [vmem:[%s1735] sm:$0xff] %v1733
      $region72: #{encoder_rnn_forward.1} parent=43 // pred_fallthru
        _
      %s1737 = sadd.s32 %s700, 6
      %p1738 = scmp.lt.s32.totalorder %s1737, 10
      // Predicated region
      $region73: #{encoder_rnn_forward.1} parent=43 // pred_check
        %p1739 = pneg %p1738
      $region74: #{encoder_rnn_forward.1} parent=43 // pred_check_branch
        %1741 = sbr.rel (%p1739) target = $region76
      $region75: #{encoder_rnn_forward.1} parent=43 // pred_region
        %v1742 = vld [vmem:[#allocation2] sm:$0xff]
        %v1743 = vld [vmem:[#allocation3 + $0x90] sm:$0xff]
        %v1744 = vld [vmem:[#allocation3 + $0x98] sm:$0xff]
        %v1745 = vld [vmem:[#allocation3 + $0xa0] sm:$0xff]
        %1746 = vmatprep.subr.mxu0 %v646
        %1747 = vmatpush1.msra.mxu0 %v645
        %1748 = vmatprep.subr.mxu0 %v649
        %1749 = vmatpush1.msra.mxu0 %v648
        %1750 = vmatprep.subr.mxu0 %v652
        %1751 = vmatpush1.msra.mxu0 %v651
        %1752 = vmatprep.subr.mxu0 %v655
        %1753 = vmatpush1.msra.mxu0 %v654
        %1754 = vmatprep.subr.mxu0 %v658
        %1755 = vmatpush1.msra.mxu0 %v657
        %1756 = vmatprep.subr.mxu0 %v661
        %1757 = vmatpush1.msra.mxu0 %v660
        %1758 = vmatprep.subr.mxu0 %v664
        %1759 = vmatpush1.msra.mxu0 %v663
        %1760 = vmatprep.subr.mxu0 %v667
        %1761 = vmatpush1.msra.mxu0 %v666
        %1762 = vmatprep.subr.mxu0 %v670
        %1763 = vmatpush1.msra.mxu0 %v669
        %1764 = vmatprep.subr.mxu0 %v673
        %1765 = vmatpush1.msra.mxu0 %v672
        %1766 = vmatprep.subr.mxu0 %v676
        %1767 = vmatpush1.msra.mxu0 %v675
        %1768 = vmatprep.subr.mxu0 %v679
        %1769 = vmatpush1.msra.mxu0 %v678
        %1770 = vmatprep.subr.mxu0 %v682
        %1771 = vmatpush1.msra.mxu0 %v681
        %1772 = vmatprep.subr.mxu0 %v685
        %1773 = vmatpush1.msra.mxu0 %v684
        %1774 = vmatprep.subr.mxu0 %v688
        %1775 = vmatpush1.msra.mxu0 %v687
        %1776 = vmatprep.subr.mxu0 %v691
        %1777 = vmatpush1.msra.mxu0 %v690
        %1778 = vmatprep.subr.mxu0 0.0
        %1779 = vmatpush1.msra.mxu0 0.0
        %1780 = vmatprep.subr.mxu0 0.0
        %1781 = vmatpush1.msra.mxu0 0.0
        %1782 = vmatprep.subr.mxu0 0.0
        %1783 = vmatpush1.msra.mxu0 0.0
        %1784 = vmatprep.subr.mxu0 0.0
        %1785 = vmatpush1.msra.mxu0 0.0
        %1786 = vmatprep.subr.mxu0 0.0
        %1787 = vmatpush1.msra.mxu0 0.0
        %1788 = vmatprep.subr.mxu0 0.0
        %1789 = vmatpush1.msra.mxu0 0.0
        %1790 = vmatprep.subr.mxu0 0.0
        %1791 = vmatpush1.msra.mxu0 0.0
        %1792 = vmatprep.subr.mxu0 0.0
        %1793 = vmatpush1.msra.mxu0 0.0
        %1794 = vmatprep.subr.mxu0 0.0
        %1795 = vmatpush1.msra.mxu0 0.0
        %1796 = vmatprep.subr.mxu0 0.0
        %1797 = vmatpush1.msra.mxu0 0.0
        %1798 = vmatprep.subr.mxu0 0.0
        %1799 = vmatpush1.msra.mxu0 0.0
        %1800 = vmatprep.subr.mxu0 0.0
        %1801 = vmatpush1.msra.mxu0 0.0
        %1802 = vmatprep.subr.mxu0 0.0
        %1803 = vmatpush1.msra.mxu0 0.0
        %1804 = vmatprep.subr.mxu0 0.0
        %1805 = vmatpush1.msra.mxu0 0.0
        %1806 = vmatprep.subr.mxu0 0.0
        %1807 = vmatpush1.msra.mxu0 0.0
        %1808 = vmatprep.subr.mxu0 0.0
        %1809 = vmatpush1.msra.mxu0 0.0
        %1810 = vmatprep.mubr.f32.mxu0 0.0
        %1811 = vmatmul.mubr.f32.gmra.mrb[0].mxu0 %v1742
        %v1812 = vpop.f32.mrb[0].mxu0
        %v1813 = vadd.f32 0.0, %v1812
        %v1814 = vpop.f32.mrb[0].mxu0
        %v1815 = vadd.f32 0.0, %v1814
        %1816 = vdwg.mxu0
        %v1817 = vadd.f32 %v1743, %v1813
        %v1818 = vxor.u32 %v1817, 2147483648
        %v1819 = vmul.f32 %v1818, 1.442695
        %v1820 = vpow.pop %v1819
        %v1821 = vadd.f32 %v1820, 1.0
        %v1822 = vrcp.pop %v1821
        %v1823 = vmul.f32 1.0, %v1822
        %v1824 = vadd.f32 %v1744, %v1815
        %v1825 = vxor.u32 %v1824, 2147483648
        %v1826 = vmul.f32 %v1825, 1.442695
        %v1827 = vpow.pop %v1826
        %v1828 = vadd.f32 %v1827, 1.0
        %v1829 = vrcp.pop %v1828
        %v1830 = vmul.f32 1.0, %v1829
        %1831 = vmatprep.subr.mxu0 0.0
        %1832 = vmatpush1.msra.mxu0 %v647
        %1833 = vmatprep.subr.mxu0 0.0
        %1834 = vmatpush1.msra.mxu0 %v650
        %1835 = vmatprep.subr.mxu0 0.0
        %1836 = vmatpush1.msra.mxu0 %v653
        %1837 = vmatprep.subr.mxu0 0.0
        %1838 = vmatpush1.msra.mxu0 %v656
        %1839 = vmatprep.subr.mxu0 0.0
        %1840 = vmatpush1.msra.mxu0 %v659
        %1841 = vmatprep.subr.mxu0 0.0
        %1842 = vmatpush1.msra.mxu0 %v662
        %1843 = vmatprep.subr.mxu0 0.0
        %1844 = vmatpush1.msra.mxu0 %v665
        %1845 = vmatprep.subr.mxu0 0.0
        %1846 = vmatpush1.msra.mxu0 %v668
        %1847 = vmatprep.subr.mxu0 0.0
        %1848 = vmatpush1.msra.mxu0 %v671
        %1849 = vmatprep.subr.mxu0 0.0
        %1850 = vmatpush1.msra.mxu0 %v674
        %1851 = vmatprep.subr.mxu0 0.0
        %1852 = vmatpush1.msra.mxu0 %v677
        %1853 = vmatprep.subr.mxu0 0.0
        %1854 = vmatpush1.msra.mxu0 %v680
        %1855 = vmatprep.subr.mxu0 0.0
        %1856 = vmatpush1.msra.mxu0 %v683
        %1857 = vmatprep.subr.mxu0 0.0
        %1858 = vmatpush1.msra.mxu0 %v686
        %1859 = vmatprep.subr.mxu0 0.0
        %1860 = vmatpush1.msra.mxu0 %v689
        %1861 = vmatprep.subr.mxu0 0.0
        %1862 = vmatpush1.msra.mxu0 %v692
        %1863 = vmatprep.subr.mxu0 0.0
        %1864 = vmatpush1.msra.mxu0 0.0
        %1865 = vmatprep.subr.mxu0 0.0
        %1866 = vmatpush1.msra.mxu0 0.0
        %1867 = vmatprep.subr.mxu0 0.0
        %1868 = vmatpush1.msra.mxu0 0.0
        %1869 = vmatprep.subr.mxu0 0.0
        %1870 = vmatpush1.msra.mxu0 0.0
        %1871 = vmatprep.subr.mxu0 0.0
        %1872 = vmatpush1.msra.mxu0 0.0
        %1873 = vmatprep.subr.mxu0 0.0
        %1874 = vmatpush1.msra.mxu0 0.0
        %1875 = vmatprep.subr.mxu0 0.0
        %1876 = vmatpush1.msra.mxu0 0.0
        %1877 = vmatprep.subr.mxu0 0.0
        %1878 = vmatpush1.msra.mxu0 0.0
        %1879 = vmatprep.subr.mxu0 0.0
        %1880 = vmatpush1.msra.mxu0 0.0
        %1881 = vmatprep.subr.mxu0 0.0
        %1882 = vmatpush1.msra.mxu0 0.0
        %1883 = vmatprep.subr.mxu0 0.0
        %1884 = vmatpush1.msra.mxu0 0.0
        %1885 = vmatprep.subr.mxu0 0.0
        %1886 = vmatpush1.msra.mxu0 0.0
        %1887 = vmatprep.subr.mxu0 0.0
        %1888 = vmatpush1.msra.mxu0 0.0
        %1889 = vmatprep.subr.mxu0 0.0
        %1890 = vmatpush1.msra.mxu0 0.0
        %1891 = vmatprep.subr.mxu0 0.0
        %1892 = vmatpush1.msra.mxu0 0.0
        %1893 = vmatprep.subr.mxu0 0.0
        %1894 = vmatpush1.msra.mxu0 0.0
        %1895 = vmatprep.mubr.f32.mxu0 0.0
        %1896 = vmatmul.mubr.f32.gmra.mrb[0].mxu0 %v1742
        %v1897 = vpop.f32.mrb[0].mxu0
        %v1898 = vadd.f32 %v698, %v1897
        %v1899 = vpop.f32.mrb[0].mxu0
        %1900 = vdwg.mxu0
        %v1901 = vmul.f32 %v1823, %v1898
        %v1902 = vadd.f32 %v1745, %v1901
        %v1903 = vtanh.pop %v1902
        %v1904 = vsub.f32 %v1742, %v1903
        %v1905 = vmul.f32 %v1830, %v1904
        %v1906 = vadd.f32 %v1903, %v1905
        %1907 = vst [vmem:[#allocation2] sm:$0xff] %v1906
        %s1908 = scalar_lea.vmem %s335, 48
        %1909 = vst [vmem:[%s1908] sm:$0xff] %v1906
      $region76: #{encoder_rnn_forward.1} parent=43 // pred_fallthru
        _
      %s1910 = sadd.s32 %s700, 7
      %p1911 = scmp.lt.s32.totalorder %s1910, 10
      // Predicated region
      $region77: #{encoder_rnn_forward.1} parent=43 // pred_check
        %p1912 = pneg %p1911
      $region78: #{encoder_rnn_forward.1} parent=43 // pred_check_branch
        %1914 = sbr.rel (%p1912) target = $region80
      $region79: #{encoder_rnn_forward.1} parent=43 // pred_region
        %v1915 = vld [vmem:[#allocation2] sm:$0xff]
        %v1916 = vld [vmem:[#allocation3 + $0xa8] sm:$0xff]
        %v1917 = vld [vmem:[#allocation3 + $0xb0] sm:$0xff]
        %v1918 = vld [vmem:[#allocation3 + $0xb8] sm:$0xff]
        %1919 = vmatprep.subr.mxu0 %v646
        %1920 = vmatpush1.msra.mxu0 %v645
        %1921 = vmatprep.subr.mxu0 %v649
        %1922 = vmatpush1.msra.mxu0 %v648
        %1923 = vmatprep.subr.mxu0 %v652
        %1924 = vmatpush1.msra.mxu0 %v651
        %1925 = vmatprep.subr.mxu0 %v655
        %1926 = vmatpush1.msra.mxu0 %v654
        %1927 = vmatprep.subr.mxu0 %v658
        %1928 = vmatpush1.msra.mxu0 %v657
        %1929 = vmatprep.subr.mxu0 %v661
        %1930 = vmatpush1.msra.mxu0 %v660
        %1931 = vmatprep.subr.mxu0 %v664
        %1932 = vmatpush1.msra.mxu0 %v663
        %1933 = vmatprep.subr.mxu0 %v667
        %1934 = vmatpush1.msra.mxu0 %v666
        %1935 = vmatprep.subr.mxu0 %v670
        %1936 = vmatpush1.msra.mxu0 %v669
        %1937 = vmatprep.subr.mxu0 %v673
        %1938 = vmatpush1.msra.mxu0 %v672
        %1939 = vmatprep.subr.mxu0 %v676
        %1940 = vmatpush1.msra.mxu0 %v675
        %1941 = vmatprep.subr.mxu0 %v679
        %1942 = vmatpush1.msra.mxu0 %v678
        %1943 = vmatprep.subr.mxu0 %v682
        %1944 = vmatpush1.msra.mxu0 %v681
        %1945 = vmatprep.subr.mxu0 %v685
        %1946 = vmatpush1.msra.mxu0 %v684
        %1947 = vmatprep.subr.mxu0 %v688
        %1948 = vmatpush1.msra.mxu0 %v687
        %1949 = vmatprep.subr.mxu0 %v691
        %1950 = vmatpush1.msra.mxu0 %v690
        %1951 = vmatprep.subr.mxu0 0.0
        %1952 = vmatpush1.msra.mxu0 0.0
        %1953 = vmatprep.subr.mxu0 0.0
        %1954 = vmatpush1.msra.mxu0 0.0
        %1955 = vmatprep.subr.mxu0 0.0
        %1956 = vmatpush1.msra.mxu0 0.0
        %1957 = vmatprep.subr.mxu0 0.0
        %1958 = vmatpush1.msra.mxu0 0.0
        %1959 = vmatprep.subr.mxu0 0.0
        %1960 = vmatpush1.msra.mxu0 0.0
        %1961 = vmatprep.subr.mxu0 0.0
        %1962 = vmatpush1.msra.mxu0 0.0
        %1963 = vmatprep.subr.mxu0 0.0
        %1964 = vmatpush1.msra.mxu0 0.0
        %1965 = vmatprep.subr.mxu0 0.0
        %1966 = vmatpush1.msra.mxu0 0.0
        %1967 = vmatprep.subr.mxu0 0.0
        %1968 = vmatpush1.msra.mxu0 0.0
        %1969 = vmatprep.subr.mxu0 0.0
        %1970 = vmatpush1.msra.mxu0 0.0
        %1971 = vmatprep.subr.mxu0 0.0
        %1972 = vmatpush1.msra.mxu0 0.0
        %1973 = vmatprep.subr.mxu0 0.0
        %1974 = vmatpush1.msra.mxu0 0.0
        %1975 = vmatprep.subr.mxu0 0.0
        %1976 = vmatpush1.msra.mxu0 0.0
        %1977 = vmatprep.subr.mxu0 0.0
        %1978 = vmatpush1.msra.mxu0 0.0
        %1979 = vmatprep.subr.mxu0 0.0
        %1980 = vmatpush1.msra.mxu0 0.0
        %1981 = vmatprep.subr.mxu0 0.0
        %1982 = vmatpush1.msra.mxu0 0.0
        %1983 = vmatprep.mubr.f32.mxu0 0.0
        %1984 = vmatmul.mubr.f32.gmra.mrb[0].mxu0 %v1915
        %v1985 = vpop.f32.mrb[0].mxu0
        %v1986 = vadd.f32 0.0, %v1985
        %v1987 = vpop.f32.mrb[0].mxu0
        %v1988 = vadd.f32 0.0, %v1987
        %1989 = vdwg.mxu0
        %v1990 = vadd.f32 %v1916, %v1986
        %v1991 = vxor.u32 %v1990, 2147483648
        %v1992 = vmul.f32 %v1991, 1.442695
        %v1993 = vpow.pop %v1992
        %v1994 = vadd.f32 %v1993, 1.0
        %v1995 = vrcp.pop %v1994
        %v1996 = vmul.f32 1.0, %v1995
        %v1997 = vadd.f32 %v1917, %v1988
        %v1998 = vxor.u32 %v1997, 2147483648
        %v1999 = vmul.f32 %v1998, 1.442695
        %v2000 = vpow.pop %v1999
        %v2001 = vadd.f32 %v2000, 1.0
        %v2002 = vrcp.pop %v2001
        %v2003 = vmul.f32 1.0, %v2002
        %2004 = vmatprep.subr.mxu0 0.0
        %2005 = vmatpush1.msra.mxu0 %v647
        %2006 = vmatprep.subr.mxu0 0.0
        %2007 = vmatpush1.msra.mxu0 %v650
        %2008 = vmatprep.subr.mxu0 0.0
        %2009 = vmatpush1.msra.mxu0 %v653
        %2010 = vmatprep.subr.mxu0 0.0
        %2011 = vmatpush1.msra.mxu0 %v656
        %2012 = vmatprep.subr.mxu0 0.0
        %2013 = vmatpush1.msra.mxu0 %v659
        %2014 = vmatprep.subr.mxu0 0.0
        %2015 = vmatpush1.msra.mxu0 %v662
        %2016 = vmatprep.subr.mxu0 0.0
        %2017 = vmatpush1.msra.mxu0 %v665
        %2018 = vmatprep.subr.mxu0 0.0
        %2019 = vmatpush1.msra.mxu0 %v668
        %2020 = vmatprep.subr.mxu0 0.0
        %2021 = vmatpush1.msra.mxu0 %v671
        %2022 = vmatprep.subr.mxu0 0.0
        %2023 = vmatpush1.msra.mxu0 %v674
        %2024 = vmatprep.subr.mxu0 0.0
        %2025 = vmatpush1.msra.mxu0 %v677
        %2026 = vmatprep.subr.mxu0 0.0
        %2027 = vmatpush1.msra.mxu0 %v680
        %2028 = vmatprep.subr.mxu0 0.0
        %2029 = vmatpush1.msra.mxu0 %v683
        %2030 = vmatprep.subr.mxu0 0.0
        %2031 = vmatpush1.msra.mxu0 %v686
        %2032 = vmatprep.subr.mxu0 0.0
        %2033 = vmatpush1.msra.mxu0 %v689
        %2034 = vmatprep.subr.mxu0 0.0
        %2035 = vmatpush1.msra.mxu0 %v692
        %2036 = vmatprep.subr.mxu0 0.0
        %2037 = vmatpush1.msra.mxu0 0.0
        %2038 = vmatprep.subr.mxu0 0.0
        %2039 = vmatpush1.msra.mxu0 0.0
        %2040 = vmatprep.subr.mxu0 0.0
        %2041 = vmatpush1.msra.mxu0 0.0
        %2042 = vmatprep.subr.mxu0 0.0
        %2043 = vmatpush1.msra.mxu0 0.0
        %2044 = vmatprep.subr.mxu0 0.0
        %2045 = vmatpush1.msra.mxu0 0.0
        %2046 = vmatprep.subr.mxu0 0.0
        %2047 = vmatpush1.msra.mxu0 0.0
        %2048 = vmatprep.subr.mxu0 0.0
        %2049 = vmatpush1.msra.mxu0 0.0
        %2050 = vmatprep.subr.mxu0 0.0
        %2051 = vmatpush1.msra.mxu0 0.0
        %2052 = vmatprep.subr.mxu0 0.0
        %2053 = vmatpush1.msra.mxu0 0.0
        %2054 = vmatprep.subr.mxu0 0.0
        %2055 = vmatpush1.msra.mxu0 0.0
        %2056 = vmatprep.subr.mxu0 0.0
        %2057 = vmatpush1.msra.mxu0 0.0
        %2058 = vmatprep.subr.mxu0 0.0
        %2059 = vmatpush1.msra.mxu0 0.0
        %2060 = vmatprep.subr.mxu0 0.0
        %2061 = vmatpush1.msra.mxu0 0.0
        %2062 = vmatprep.subr.mxu0 0.0
        %2063 = vmatpush1.msra.mxu0 0.0
        %2064 = vmatprep.subr.mxu0 0.0
        %2065 = vmatpush1.msra.mxu0 0.0
        %2066 = vmatprep.subr.mxu0 0.0
        %2067 = vmatpush1.msra.mxu0 0.0
        %2068 = vmatprep.mubr.f32.mxu0 0.0
        %2069 = vmatmul.mubr.f32.gmra.mrb[0].mxu0 %v1915
        %v2070 = vpop.f32.mrb[0].mxu0
        %v2071 = vadd.f32 %v698, %v2070
        %v2072 = vpop.f32.mrb[0].mxu0
        %2073 = vdwg.mxu0
        %v2074 = vmul.f32 %v1996, %v2071
        %v2075 = vadd.f32 %v1918, %v2074
        %v2076 = vtanh.pop %v2075
        %v2077 = vsub.f32 %v1915, %v2076
        %v2078 = vmul.f32 %v2003, %v2077
        %v2079 = vadd.f32 %v2076, %v2078
        %2080 = vst [vmem:[#allocation2] sm:$0xff] %v2079
        %s2081 = scalar_lea.vmem %s335, 56
        %2082 = vst [vmem:[%s2081] sm:$0xff] %v2079
      $region80: #{encoder_rnn_forward.1} parent=43 // pred_fallthru
        _
      %p2083 = scmp.eq.s32.totalorder %s24, 1
      // Predicated region
      $region81: #{encoder_rnn_forward.1} parent=43 // pred_check
        %p2084 = pneg %p2083
      $region82: #{encoder_rnn_forward.1} parent=43 // pred_check_branch
        %2086 = sbr.rel (%p2084) target = $region84
      $region83: #{encoder_rnn_forward.1} parent=43 // pred_region
        %v2087 = vld [vmem:[#allocation2] sm:$0xff]
        %2088 = vst [vmem:[%s340] sm:$0xff] %v2087
      $region84: #{encoder_rnn_forward.1} parent=43 // pred_fallthru
        _
      %s2089 = smul.u32 8, %s24
      %p2090 = scmp.lt.s32.totalorder %s2089, 15
      %s2091 = scalar_select %p2090, %s2089, 15
      %p2092 = scmp.lt.s32.totalorder %s23, 0
      %s2093 = scalar_select %p2092, %s23, 0
      %s2094 = sadd.s32 %s2093, %s2091
      %s2095 = smul.addr %s2094, 8
      %s2096 = scalar_lea.vmem %s6, %s2095
      %p2097 = scmp.lt.s32.totalorder %s23, 0
      %s2098 = scalar_select %p2097, %s23, 0
      %s2099 = smul.addr %s2098, 8
      %s2100 = scalar_lea.vmem %s7, %s2099
      // Predicated region
      $region85: #{encoder_rnn_forward.1} parent=43 // pred_check
        %p2101 = pneg %p189
      $region86: #{encoder_rnn_forward.1} parent=43 // pred_check_branch
        %2103 = sbr.rel (%p2101) target = $region88
      $region87: #{encoder_rnn_forward.1} parent=43 // pred_region
        %s2104 = smul.u32 8, %s24
      $region88: #{encoder_rnn_forward.1} parent=43 // pred_fallthru
        _
      // Predicated region
      $region89: #{encoder_rnn_forward.1} parent=43 // pred_check
        %p2105 = pneg %p215
      $region90: #{encoder_rnn_forward.1} parent=43 // pred_check_branch
        %2107 = sbr.rel (%p2105) target = $region92
      $region91: #{encoder_rnn_forward.1} parent=43 // pred_region
        _
      $region92: #{encoder_rnn_forward.1} parent=43 // pred_fallthru
        _
      // Predicated region
      $region93: #{encoder_rnn_forward.1} parent=43 // pred_check
        %p2108 = pneg %p215
      $region94: #{encoder_rnn_forward.1} parent=43 // pred_check_branch
        %2110 = sbr.rel (%p2108) target = $region96
      $region95: #{encoder_rnn_forward.1} parent=43 // pred_region
        %p2111 = scmp.lt.s32.totalorder %s23, 0
        %s2112 = scalar_select %p2111, %s23, 0
        %s2113 = smul.addr %s2112, 8
        %s2114 = scalar_lea.vmem %s7, %s2113
      $region96: #{encoder_rnn_forward.1} parent=43 // pred_fallthru
        _
    $region44: #{encoder_rnn_forward.1} parent=5 // pred_fallthru
      _
    %p2115 = scmp.le.s32.totalorder 2, %s14
    // Predicated region
    $region97: #{encoder_rnn_forward.1} parent=5 // pred_check
      %p2116 = pneg %p2115
    $region98: #{encoder_rnn_forward.1} parent=5 // pred_check_branch
      %2118 = sbr.rel (%p2116) target = $region100
    $region99: #{encoder_rnn_forward.1} parent=5 // pred_region
      %s2119 = ssub.s32 %s14, 2
      // Predicated region
      $region101: #{encoder_rnn_forward.1} parent=99 // pred_check
        %p2120 = pneg %p195
      $region102: #{encoder_rnn_forward.1} parent=99 // pred_check_branch
        %2122 = sbr.rel (%p2120) target = $region104
      $region103: #{encoder_rnn_forward.1} parent=99 // pred_region
        %s2123 = smul.u32 8, %s26
        %p2124 = scmp.lt.s32.totalorder %s2123, 15
        %s2125 = scalar_select %p2124, %s2123, 15
        %p2126 = scmp.lt.s32.totalorder %s25, 0
        %s2127 = scalar_select %p2126, %s25, 0
        %s2128 = sadd.s32 %s2127, %s2125
        %s2129 = smul.addr %s2128, 8
        %s2130 = scalar_lea.vmem %s6, %s2129
      $region104: #{encoder_rnn_forward.1} parent=99 // pred_fallthru
        _
    $region100: #{encoder_rnn_forward.1} parent=5 // pred_fallthru
      _
  $region6: #{encoder_rnn_forward.1} parent=0 // loop_footer
    %s18 = sadd.s32 1, %s14
  $region7: #{encoder_rnn_forward.1} parent=0 // loop_footer_branch
    %13 = sbr.rel target = $region3
  $region8: #{encoder_rnn_forward.1} parent=0 // loop_exit
    _

</llo_original>
